<compile_context>
chip_gen: v7x
topology: tpu7x:2x2x1
jax: 0.10.0
libtpu: 0.0.40
codegen_flags: <defaults>
</compile_context>

<pallas_src>
import math

import jax
import jax.numpy as jnp
from jax import lax
from jax.experimental import pallas as pl
from jax.experimental.pallas import tpu as pltpu


def _gelu_tanh(x):
    c = math.sqrt(2.0 / math.pi)
    return 0.5 * x * (1.0 + jnp.tanh(c * (x + 0.044715 * x * x * x)))


# ----------------------------------------------------------------------------
# Hardware-aware sizing helpers
# ----------------------------------------------------------------------------
def _num_tensorcores():
    """2 on v7x-class chips (two TensorCores per chip), else 1 (v5e/v6e)."""
    try:
        kind = jax.devices()[0].device_kind.lower()
    except Exception:
        return 1
    return 2 if "v7" in kind else 1


def _tpu_vmem_capacity_bytes():
    try:
        return int(pltpu.get_tpu_info().vmem_capacity_bytes)
    except Exception:
        return 64 << 20   # conservative fallback (v7x per-TensorCore VMEM)


def _vmem_limit_bytes(needed):
    """Explicit scoped-VMEM limit: at least the (generous) requirement, with headroom
    left below the physical capacity of the current generation."""
    cap = _tpu_vmem_capacity_bytes()
    ceiling = int(cap * 3 // 4)
    return int(min(max(int(needed), 32 << 20), ceiling))


def _sublane(itemsize):
    return 8 if itemsize >= 4 else (16 if itemsize == 2 else 32)


# ----------------------------------------------------------------------------
# Kernel 1: attention branch  out = x + gamma1 * proj(cross_attn(LN1(x), LN1(y)))
# ----------------------------------------------------------------------------
def _make_attn_branch_kernel(num_heads, head_dim, dim, bt, n, scale, eps):
    rows = bt * n

    def kernel(x_ref, y_ref, ln_w_ref, ln_b_ref, wq_ref, wkv_ref, wproj_ref,
               bproj_ref, g1_ref, o_ref):
        dot_dt = x_ref.dtype
        xf = x_ref[...].reshape(rows, dim).astype(jnp.float32)    # batch-stacked rows
        yf = y_ref[...].reshape(rows, dim).astype(jnp.float32)
        w = ln_w_ref[...].astype(jnp.float32)                     # (1, D)
        b = ln_b_ref[...].astype(jnp.float32)                     # (1, D)

        def layernorm(z):
            mu = jnp.mean(z, axis=-1, keepdims=True)
            zc = z - mu
            var = jnp.mean(zc * zc, axis=-1, keepdims=True)
            return zc * lax.rsqrt(var + eps) * w + b

        nx = layernorm(xf).astype(dot_dt)
        ny = layernorm(yf).astype(dot_dt)

        # Sliced QKV: x needs only the Q columns, y only the K/V columns.
        q = jnp.dot(nx, wq_ref[...], preferred_element_type=jnp.float32)     # (rows, D)
        kv = jnp.dot(ny, wkv_ref[...], preferred_element_type=jnp.float32)   # (rows, 2D)

        # Per-head attention, batched over the Bt batch dim.  The module computes
        #   p = softmax(q @ k^T * scale, axis=-1); out = p^T * v  (elementwise, N1 == head_dim)
        # We build p^T directly as k @ q^T and softmax over the N2 axis (no transpose).
        head_outs = []
        for h in range(num_heads):
            s0 = h * head_dim
            q_h = q[:, s0:s0 + head_dim].reshape(bt, n, head_dim)              # (Bt, N1, hd)
            k_h = kv[:, s0:s0 + head_dim].reshape(bt, n, head_dim)             # (Bt, N2, hd)
            v_h = kv[:, dim + s0:dim + s0 + head_dim].reshape(bt, n, head_dim)  # (Bt, N2, hd)
            s_t = lax.dot_general(k_h, q_h, (((2,), (2,)), ((0,), (0,))),
                                  preferred_element_type=jnp.float32) * scale   # (Bt, N2, N1)
            s_t = s_t - jnp.max(s_t, axis=1, keepdims=True)          # softmax over N2 (axis 1)
            p_t = jnp.exp(s_t)
            p_t = p_t / jnp.sum(p_t, axis=1, keepdims=True)
            head_outs.append(p_t * v_h)                              # (Bt, N2, hd), N1 == hd

        # Lane-dense, in-register concat (no VMEM scratch, no masked partial stores).
        attn_out = jnp.concatenate(head_outs, axis=-1).reshape(rows, dim)
        proj = (jnp.dot(attn_out.astype(dot_dt), wproj_ref[...],
                        preferred_element_type=jnp.float32)
                + bproj_ref[...].astype(jnp.float32))
        out = xf + g1_ref[...].astype(jnp.float32) * proj
        o_ref[...] = out.reshape(bt, n, dim).astype(o_ref.dtype)

    return kernel


def _choose_batch_tile(B, N, D, itemsize, num_tc):
    """Largest divisor of B such that Bt*N rows feed the MXU well (~256 rows) and the
    per-step blocks stay modest; on 2-TensorCore chips keep >= 2 grid steps."""
    target_rows = 256
    per_row_bytes = 3 * 2 * D * itemsize + 8 * D * 4   # x/y/out double-buffered + f32 temps
    row_cap = max(N, (24 << 20) // max(per_row_bytes, 1))
    cap_rows = max(N, min(target_rows, row_cap))
    max_bt = B // 2 if (num_tc >= 2 and B >= 2) else B
    best = 1
    for bt in range(1, max_bt + 1):
        if B % bt == 0 and bt * N <= cap_rows:
            best = bt
    return best


def _attn_branch(x, y, p, eps):
    B, N, D = x.shape
    H = p["num_heads"]
    hd = D // H
    scale = hd ** (-0.5)
    itemsize = jnp.dtype(x.dtype).itemsize
    num_tc = _num_tensorcores()
    Bt = _choose_batch_tile(B, N, D, itemsize, num_tc)
    kernel = _make_attn_branch_kernel(H, hd, D, Bt, N, scale, eps)

    w_qkv = p["w_qkv"]
    w_q, w_kv = w_qkv[:, :D], w_qkv[:, D:]     # split once: x needs Q only, y needs K/V only
    w_itemsize = jnp.dtype(w_qkv.dtype).itemsize

    blk_bytes = Bt * N * D * itemsize
    weight_bytes = (D * D + D * 2 * D + D * D + 5 * D) * w_itemsize
    inter_bytes = Bt * N * (6 * D) * 4          # f32 intermediates (q, kv, attn_out, proj, ...)
    needed = 3 * 2 * blk_bytes + 2 * weight_bytes + inter_bytes + (4 << 20)

    const = lambda shape: pl.BlockSpec(shape, lambda i: tuple(0 for _ in shape))
    return pl.pallas_call(
        kernel,
        out_shape=jax.ShapeDtypeStruct((B, N, D), x.dtype),
        grid_spec=pltpu.PrefetchScalarGridSpec(
            num_scalar_prefetch=0,
            grid=(B // Bt,),
            in_specs=[
                pl.BlockSpec((Bt, N, D), lambda i: (i, 0, 0)),   # x batch tile
                pl.BlockSpec((Bt, N, D), lambda i: (i, 0, 0)),   # y batch tile
                const((1, D)),                                   # ln1 weight
                const((1, D)),                                   # ln1 bias
                const((D, D)),                                   # W_q  (transposed)
                const((D, 2 * D)),                               # W_kv (transposed)
                const((D, D)),                                   # W_proj (transposed)
                const((1, D)),                                   # b_proj
                const((1, D)),                                   # gamma1
            ],
            out_specs=pl.BlockSpec((Bt, N, D), lambda i: (i, 0, 0)),
        ),
        compiler_params=pltpu.CompilerParams(
            dimension_semantics=("parallel",),
            vmem_limit_bytes=_vmem_limit_bytes(needed)),
    )(x, y,
      p["ln1_w"].reshape(1, D), p["ln1_b"].reshape(1, D),
      w_q, w_kv, p["w_proj"], p["b_proj"].reshape(1, D),
      p["gamma1"].reshape(1, D))


# ----------------------------------------------------------------------------
# Kernel 2: MLP branch  out = x + gamma2 * fc2(gelu(fc1(LN2(x))))   (row-parallel)
# ----------------------------------------------------------------------------
_MAX_HIDDEN_CHUNK = 2048   # caps the live (tile, hidden_chunk) f32 fc1 activation


def _make_mlp_branch_kernel(eps, hidden, hidden_chunk):
    n_chunks = -(-hidden // hidden_chunk)

    def kernel(x_ref, ln_w_ref, ln_b_ref, w1_ref, b1_ref, w2_ref, b2_ref, g2_ref, o_ref):
        dot_dt = x_ref.dtype
        xf = x_ref[...].astype(jnp.float32)                     # (tile, D)
        w = ln_w_ref[...].astype(jnp.float32)
        b = ln_b_ref[...].astype(jnp.float32)

        mu = jnp.mean(xf, axis=-1, keepdims=True)
        xc = xf - mu
        var = jnp.mean(xc * xc, axis=-1, keepdims=True)
        nx = (xc * lax.rsqrt(var + eps) * w + b).astype(dot_dt)

        m = jnp.zeros_like(xf)                                  # (tile, D) f32 accumulator
        for c in range(n_chunks):                               # static hidden-dim chunking
            c0 = c * hidden_chunk
            c1 = min(hidden, c0 + hidden_chunk)
            h = (jnp.dot(nx, w1_ref[:, c0:c1], preferred_element_type=jnp.float32)
                 + b1_ref[:, c0:c1].astype(jnp.float32))
            h = _gelu_tanh(h)
            m = m + jnp.dot(h.astype(w2_ref.dtype), w2_ref[c0:c1, :],
                            preferred_element_type=jnp.float32)
        m = m + b2_ref[...].astype(jnp.float32)
        o_ref[...] = (xf + g2_ref[...].astype(jnp.float32) * m).astype(o_ref.dtype)

    return kernel


def _choose_mlp_tile_rows(R, D, hidden, hidden_chunk, x_itemsize, w_itemsize,
                          vmem_cap, num_tc, requested=None):
    """Largest sublane-aligned row tile such that resident (double-buffered) weights plus
    double-buffered x/out tiles plus the fc1 activation chunk fit the generation's VMEM.
    Only force >= 2 grid steps on 2-TensorCore chips (v7x)."""
    sublane = _sublane(x_itemsize)
    if requested is not None:
        if R < sublane:
            return R
        return min(R, max(sublane, (int(requested) // sublane) * sublane))
    weight_bytes = 2 * (D * hidden + hidden * D + hidden + 5 * D) * w_itemsize
    budget = max(int(vmem_cap * 0.7) - weight_bytes, 2 << 20)
    per_row = (2 * 2 * D * x_itemsize          # x / out tiles, double-buffered
               + hidden_chunk * 4              # fc1 activation chunk (f32)
               + 6 * D * 4)                    # f32 elementwise temporaries
    cap_rows = max(sublane, budget // max(per_row, 1))
    tile = min(R, 2048, int(cap_rows))
    if tile < R:
        tile = max(sublane, (tile // sublane) * sublane)
    if num_tc >= 2 and R >= 2 * sublane:       # shard across the two v7x TensorCores
        tile = min(tile, max(sublane, ((R // 2) // sublane) * sublane))
    return tile


def _mlp_branch(x, p, eps, tile_rows=None):
    B, N, D = x.shape
    hidden = p["w_fc1"].shape[1]
    R = B * N
    x2 = x.reshape(R, D)
    x_itemsize = jnp.dtype(x.dtype).itemsize
    w_itemsize = jnp.dtype(p["w_fc1"].dtype).itemsize
    vmem_cap = _tpu_vmem_capacity_bytes()
    num_tc = _num_tensorcores()
    hidden_chunk = min(hidden, _MAX_HIDDEN_CHUNK)
    tile = _choose_mlp_tile_rows(R, D, hidden, hidden_chunk, x_itemsize, w_itemsize,
                                 vmem_cap, num_tc, requested=tile_rows)
    grid = (pl.cdiv(R, tile),)
    kernel = _make_mlp_branch_kernel(eps, hidden, hidden_chunk)

    weight_bytes = (D * hidden + hidden * D + hidden + 5 * D) * w_itemsize
    needed = (2 * weight_bytes + 2 * 2 * tile * D * x_itemsize
              + tile * (hidden_chunk * 4 + 6 * D * 4) + (4 << 20))

    const = lambda shape: pl.BlockSpec(shape, lambda i: tuple(0 for _ in shape))
    out = pl.pallas_call(
        kernel,
        out_shape=jax.ShapeDtypeStruct((R, D), x.dtype),
        grid_spec=pltpu.PrefetchScalarGridSpec(
            num_scalar_prefetch=0,
            grid=grid,
            in_specs=[
                pl.BlockSpec((tile, D), lambda i: (i, 0)),      # x rows
                const((1, D)),                                  # ln2 weight
                const((1, D)),                                  # ln2 bias
                const((D, hidden)),                             # W_fc1 (transposed)
                const((1, hidden)),                             # b_fc1
                const((hidden, D)),                             # W_fc2 (transposed)
                const((1, D)),                                  # b_fc2
                const((1, D)),                                  # gamma2
            ],
            out_specs=pl.BlockSpec((tile, D), lambda i: (i, 0)),
        ),
        compiler_params=pltpu.CompilerParams(
            dimension_semantics=("parallel",),
            vmem_limit_bytes=_vmem_limit_bytes(needed)),
    )(x2,
      p["ln2_w"].reshape(1, D), p["ln2_b"].reshape(1, D),
      p["w_fc1"], p["b_fc1"].reshape(1, hidden),
      p["w_fc2"], p["b_fc2"].reshape(1, D),
      p["gamma2"].reshape(1, D))
    return out.reshape(B, N, D)


def cross_block(x, y, params, *, eps=1e-5, mlp_tile_rows=None):
    """Fused CrossBlock forward: two Pallas kernels (attention branch, MLP branch)."""
    B1, N1, C1 = x.shape
    B2, N2, C2 = y.shape
    H = params["num_heads"]
    hd = C1 // H
    if not (B1 == B2 and C1 == C2 and N1 == N2 and N1 == hd):
        raise ValueError(
            "CrossBlock's elementwise attn*v epilogue and residual add require "
            f"N1 == N2 == head_dim and matching batch/dim; got x{x.shape}, y{y.shape}, "
            f"head_dim={hd}.")
    x = _attn_branch(x, y, params, eps)
    x = _mlp_branch(x, params, eps, tile_rows=mlp_tile_rows)
    return x


# ----------------------------------------------------------------------------
# Pure-JAX reference (literal port of the PyTorch forward)
# ----------------------------------------------------------------------------
def cross_block_ref(x, y, p, eps=1e-5):
    def ln(z, w, b):
        mu = z.mean(-1, keepdims=True)
        var = ((z - mu) ** 2).mean(-1, keepdims=True)
        return (z - mu) / jnp.sqrt(var + eps) * w + b

    B, N1, C = x.shape
    H = p["num_heads"]
    hd = C // H
    scale = hd ** (-0.5)

    nx = ln(x, p["ln1_w"], p["ln1_b"])
    ny = ln(y, p["ln1_w"], p["ln1_b"])
    qkv_x = nx @ p["w_qkv"]
    qkv_y = ny @ p["w_qkv"]

    def split(t, which):
        Bq, Nq, _ = t.shape
        t = t.reshape(Bq, Nq, 3, H, hd).transpose(2, 0, 3, 1, 4)   # (3, B, H, N, hd)
        return t[which]

    q = split(qkv_x, 0)
    k = split(qkv_y, 1)
    v = split(qkv_y, 2)

    attn = jnp.einsum("bhnd,bhmd->bhnm", q, k) * scale
    attn = jax.nn.softmax(attn, axis=-1)
    attn = jnp.swapaxes(attn, -2, -1)                              # (B, H, N2, N1)
    o = attn * v                                                   # elementwise (N1 == hd)
    o = jnp.swapaxes(o, 1, 2).reshape(B, N1, C)
    o = o @ p["w_proj"] + p["b_proj"]
    x = x + p["gamma1"] * o

    nx2 = ln(x, p["ln2_w"], p["ln2_b"])
    h = _gelu_tanh(nx2 @ p["w_fc1"] + p["b_fc1"])
    m = h @ p["w_fc2"] + p["b_fc2"]
    x = x + p["gamma2"] * m
    return x


if __name__ == "__main__":
    key = jax.random.PRNGKey(0)
    B = 2
    dim = 32
    num_heads = 4
    head_dim = dim // num_heads          # 8
    # The module's elementwise attn*v and the residual add require seq_len == head_dim, N1 == N2.
    N = head_dim                         # 8
    hidden = int(dim * 4.0)              # mlp_ratio = 4.0 -> 128
    init_values = 0.5                    # LayerScale init (exercises ls1/ls2)

    keys = jax.random.split(key, 14)
    x = jax.random.normal(keys[0], (B, N, dim), jnp.float32)
    y = jax.random.normal(keys[1], (B, N, dim), jnp.float32)

    params = dict(
        num_heads=num_heads,
        ln1_w=1.0 + 0.1 * jax.random.normal(keys[2], (dim,), jnp.float32),
        ln1_b=0.1 * jax.random.normal(keys[3], (dim,), jnp.float32),
        # Linear weights stored already transposed for right-multiplication (in, out).
        w_qkv=jax.random.normal(keys[4], (dim, 3 * dim), jnp.float32) / math.sqrt(dim),
        w_proj=jax.random.normal(keys[5], (dim, dim), jnp.float32) / math.sqrt(dim),
        b_proj=0.1 * jax.random.normal(keys[6], (dim,), jnp.float32),
        gamma1=jnp.full((dim,), init_values, jnp.float32),
        ln2_w=1.0 + 0.1 * jax.random.normal(keys[7], (dim,), jnp.float32),
        ln2_b=0.1 * jax.random.normal(keys[8], (dim,), jnp.float32),
        w_fc1=jax.random.normal(keys[9], (dim, hidden), jnp.float32) / math.sqrt(dim),
        b_fc1=0.1 * jax.random.normal(keys[10], (hidden,), jnp.float32),
        w_fc2=jax.random.normal(keys[11], (hidden, dim), jnp.float32) / math.sqrt(hidden),
        b_fc2=0.1 * jax.random.normal(keys[12], (dim,), jnp.float32),
        gamma2=jnp.full((dim,), init_values, jnp.float32),
    )

    out = cross_block(x, y, params)
    out = jax.block_until_ready(out)

    with jax.default_matmul_precision("highest"):
        ref = cross_block_ref(x, y, params)
    ref = jax.block_until_ready(ref)

    max_diff = float(jnp.max(jnp.abs(out - ref)))
    assert out.shape == x.shape
    assert jnp.allclose(out, ref, atol=1e-4, rtol=1e-4), f"max |diff| = {max_diff}"

    print("KERNEL_OK")
</pallas_src>

<mosaic_0001>
module attributes {stable_mosaic.version = 11 : i64} {
  func.func @kernel(%arg0: i32, %arg1: memref<2x8x32xf32, #tpu.memory_space<vmem>>, %arg2: memref<2x8x32xf32, #tpu.memory_space<vmem>>, %arg3: memref<1x32xf32, #tpu.memory_space<vmem>>, %arg4: memref<1x32xf32, #tpu.memory_space<vmem>>, %arg5: memref<32x32xf32, #tpu.memory_space<vmem>>, %arg6: memref<32x64xf32, #tpu.memory_space<vmem>>, %arg7: memref<32x32xf32, #tpu.memory_space<vmem>>, %arg8: memref<1x32xf32, #tpu.memory_space<vmem>>, %arg9: memref<1x32xf32, #tpu.memory_space<vmem>>, %arg10: memref<2x8x32xf32, #tpu.memory_space<vmem>>) attributes {dimension_semantics = [#tpu.dimension_semantics<parallel>], iteration_bounds = array<i64: 1>, scalar_prefetch = 0 : i64, scratch_operands = 0 : i64, tpu.core_type = #tpu.core_type<tc>, window_params = [{transform_indices = @transform_0, window_bounds = array<i64: 2, 8, 32>}, {transform_indices = @transform_1, window_bounds = array<i64: 2, 8, 32>}, {pipeline_mode = #tpu.pipeline_mode<synchronous>, transform_indices = @transform_2, window_bounds = array<i64: 1, 32>}, {pipeline_mode = #tpu.pipeline_mode<synchronous>, transform_indices = @transform_3, window_bounds = array<i64: 1, 32>}, {pipeline_mode = #tpu.pipeline_mode<synchronous>, transform_indices = @transform_4, window_bounds = array<i64: 32, 32>}, {pipeline_mode = #tpu.pipeline_mode<synchronous>, transform_indices = @transform_5, window_bounds = array<i64: 32, 64>}, {pipeline_mode = #tpu.pipeline_mode<synchronous>, transform_indices = @transform_6, window_bounds = array<i64: 32, 32>}, {pipeline_mode = #tpu.pipeline_mode<synchronous>, transform_indices = @transform_7, window_bounds = array<i64: 1, 32>}, {pipeline_mode = #tpu.pipeline_mode<synchronous>, transform_indices = @transform_8, window_bounds = array<i64: 1, 32>}, {transform_indices = @transform_9, window_bounds = array<i64: 2, 8, 32>}]} {
    %c0 = arith.constant 0 : index
    %c0_0 = arith.constant 0 : index
    %c0_1 = arith.constant 0 : index
    %0 = vector.load %arg1[%c0, %c0_0, %c0_1] : memref<2x8x32xf32, #tpu.memory_space<vmem>>, vector<2x8x32xf32>
    %1 = vector.shape_cast %0 : vector<2x8x32xf32> to vector<16x32xf32>
    %c0_2 = arith.constant 0 : index
    %c0_3 = arith.constant 0 : index
    %c0_4 = arith.constant 0 : index
    %2 = vector.load %arg2[%c0_2, %c0_3, %c0_4] : memref<2x8x32xf32, #tpu.memory_space<vmem>>, vector<2x8x32xf32>
    %3 = vector.shape_cast %2 : vector<2x8x32xf32> to vector<16x32xf32>
    %c0_5 = arith.constant 0 : index
    %c0_6 = arith.constant 0 : index
    %4 = vector.load %arg3[%c0_5, %c0_6] : memref<1x32xf32, #tpu.memory_space<vmem>>, vector<1x32xf32>
    %c0_7 = arith.constant 0 : index
    %c0_8 = arith.constant 0 : index
    %5 = vector.load %arg4[%c0_7, %c0_8] : memref<1x32xf32, #tpu.memory_space<vmem>>, vector<1x32xf32>
    %cst = arith.constant dense<0.000000e+00> : vector<16xf32>
    %6 = vector.multi_reduction <add>, %1, %cst [1] : vector<16x32xf32> to vector<16xf32>
    %7 = vector.shape_cast %6 : vector<16xf32> to vector<16x1xf32>
    %cst_9 = arith.constant 3.200000e+01 : f32
    %8 = vector.broadcast %cst_9 : f32 to vector<16x1xf32>
    %9 = arith.divf %7, %8 : vector<16x1xf32>
    %10 = vector.broadcast %9 : vector<16x1xf32> to vector<16x32xf32>
    %11 = arith.subf %1, %10 : vector<16x32xf32>
    %12 = arith.mulf %11, %11 : vector<16x32xf32>
    %cst_10 = arith.constant dense<0.000000e+00> : vector<16xf32>
    %13 = vector.multi_reduction <add>, %12, %cst_10 [1] : vector<16x32xf32> to vector<16xf32>
    %14 = vector.shape_cast %13 : vector<16xf32> to vector<16x1xf32>
    %cst_11 = arith.constant 3.200000e+01 : f32
    %15 = vector.broadcast %cst_11 : f32 to vector<16x1xf32>
    %16 = arith.divf %14, %15 : vector<16x1xf32>
    %cst_12 = arith.constant 9.99999974E-6 : f32
    %17 = vector.broadcast %cst_12 : f32 to vector<16x1xf32>
    %18 = arith.addf %16, %17 : vector<16x1xf32>
    %19 = math.rsqrt %18 : vector<16x1xf32>
    %20 = vector.broadcast %19 : vector<16x1xf32> to vector<16x32xf32>
    %21 = arith.mulf %11, %20 : vector<16x32xf32>
    %22 = vector.broadcast %4 : vector<1x32xf32> to vector<16x32xf32>
    %23 = arith.mulf %21, %22 : vector<16x32xf32>
    %24 = vector.broadcast %5 : vector<1x32xf32> to vector<16x32xf32>
    %25 = arith.addf %23, %24 : vector<16x32xf32>
    %cst_13 = arith.constant dense<0.000000e+00> : vector<16xf32>
    %26 = vector.multi_reduction <add>, %3, %cst_13 [1] : vector<16x32xf32> to vector<16xf32>
    %27 = vector.shape_cast %26 : vector<16xf32> to vector<16x1xf32>
    %cst_14 = arith.constant 3.200000e+01 : f32
    %28 = vector.broadcast %cst_14 : f32 to vector<16x1xf32>
    %29 = arith.divf %27, %28 : vector<16x1xf32>
    %30 = vector.broadcast %29 : vector<16x1xf32> to vector<16x32xf32>
    %31 = arith.subf %3, %30 : vector<16x32xf32>
    %32 = arith.mulf %31, %31 : vector<16x32xf32>
    %cst_15 = arith.constant dense<0.000000e+00> : vector<16xf32>
    %33 = vector.multi_reduction <add>, %32, %cst_15 [1] : vector<16x32xf32> to vector<16xf32>
    %34 = vector.shape_cast %33 : vector<16xf32> to vector<16x1xf32>
    %cst_16 = arith.constant 3.200000e+01 : f32
    %35 = vector.broadcast %cst_16 : f32 to vector<16x1xf32>
    %36 = arith.divf %34, %35 : vector<16x1xf32>
    %cst_17 = arith.constant 9.99999974E-6 : f32
    %37 = vector.broadcast %cst_17 : f32 to vector<16x1xf32>
    %38 = arith.addf %36, %37 : vector<16x1xf32>
    %39 = math.rsqrt %38 : vector<16x1xf32>
    %40 = vector.broadcast %39 : vector<16x1xf32> to vector<16x32xf32>
    %41 = arith.mulf %31, %40 : vector<16x32xf32>
    %42 = vector.broadcast %4 : vector<1x32xf32> to vector<16x32xf32>
    %43 = arith.mulf %41, %42 : vector<16x32xf32>
    %44 = vector.broadcast %5 : vector<1x32xf32> to vector<16x32xf32>
    %45 = arith.addf %43, %44 : vector<16x32xf32>
    %c0_18 = arith.constant 0 : index
    %c0_19 = arith.constant 0 : index
    %46 = vector.load %arg5[%c0_18, %c0_19] : memref<32x32xf32, #tpu.memory_space<vmem>>, vector<32x32xf32>
    %cst_20 = arith.constant dense<0.000000e+00> : vector<16x32xf32>
    %47 = tpu.matmul %25, %46, %cst_20 {dimension_numbers = #tpu.dot_dimension_numbers<[1], [0], [0], [1], [0, 0, 1, 1], [], []>} : vector<16x32xf32>, vector<32x32xf32>, vector<16x32xf32> -> vector<16x32xf32>
    %c0_21 = arith.constant 0 : index
    %c0_22 = arith.constant 0 : index
    %48 = vector.load %arg6[%c0_21, %c0_22] : memref<32x64xf32, #tpu.memory_space<vmem>>, vector<32x64xf32>
    %cst_23 = arith.constant dense<0.000000e+00> : vector<16x64xf32>
    %49 = tpu.matmul %45, %48, %cst_23 {dimension_numbers = #tpu.dot_dimension_numbers<[1], [0], [0], [1], [0, 0, 1, 1], [], []>} : vector<16x32xf32>, vector<32x64xf32>, vector<16x64xf32> -> vector<16x64xf32>
    %50 = vector.extract_strided_slice %47 {offsets = [0, 0], sizes = [16, 8], strides = [1, 1]} : vector<16x32xf32> to vector<16x8xf32>
    %51 = vector.shape_cast %50 : vector<16x8xf32> to vector<2x8x8xf32>
    %52 = vector.extract_strided_slice %49 {offsets = [0, 0], sizes = [16, 8], strides = [1, 1]} : vector<16x64xf32> to vector<16x8xf32>
    %53 = vector.shape_cast %52 : vector<16x8xf32> to vector<2x8x8xf32>
    %54 = vector.extract_strided_slice %49 {offsets = [0, 32], sizes = [16, 8], strides = [1, 1]} : vector<16x64xf32> to vector<16x8xf32>
    %55 = vector.shape_cast %54 : vector<16x8xf32> to vector<2x8x8xf32>
    %cst_24 = arith.constant dense<0.000000e+00> : vector<2x8x8xf32>
    %56 = tpu.matmul %53, %51, %cst_24 {dimension_numbers = #tpu.dot_dimension_numbers<[2], [2], [1], [1], [0, 0, 0, 1, 1, 1], [0], [0]>} : vector<2x8x8xf32>, vector<2x8x8xf32>, vector<2x8x8xf32> -> vector<2x8x8xf32>
    %cst_25 = arith.constant 0.353553385 : f32
    %57 = vector.broadcast %cst_25 : f32 to vector<2x8x8xf32>
    %58 = arith.mulf %56, %57 : vector<2x8x8xf32>
    %cst_26 = arith.constant dense<0xFF800000> : vector<2x8xf32>
    %59 = vector.multi_reduction <maximumf>, %58, %cst_26 [1] : vector<2x8x8xf32> to vector<2x8xf32>
    %60 = vector.shape_cast %59 : vector<2x8xf32> to vector<2x1x8xf32>
    %61 = vector.broadcast %60 : vector<2x1x8xf32> to vector<2x8x8xf32>
    %62 = arith.subf %58, %61 : vector<2x8x8xf32>
    %63 = math.exp %62 : vector<2x8x8xf32>
    %cst_27 = arith.constant dense<0.000000e+00> : vector<2x8xf32>
    %64 = vector.multi_reduction <add>, %63, %cst_27 [1] : vector<2x8x8xf32> to vector<2x8xf32>
    %65 = vector.shape_cast %64 : vector<2x8xf32> to vector<2x1x8xf32>
    %66 = vector.broadcast %65 : vector<2x1x8xf32> to vector<2x8x8xf32>
    %67 = arith.divf %63, %66 : vector<2x8x8xf32>
    %68 = arith.mulf %67, %55 : vector<2x8x8xf32>
    %69 = vector.extract_strided_slice %47 {offsets = [0, 8], sizes = [16, 8], strides = [1, 1]} : vector<16x32xf32> to vector<16x8xf32>
    %70 = vector.shape_cast %69 : vector<16x8xf32> to vector<2x8x8xf32>
    %71 = vector.extract_strided_slice %49 {offsets = [0, 8], sizes = [16, 8], strides = [1, 1]} : vector<16x64xf32> to vector<16x8xf32>
    %72 = vector.shape_cast %71 : vector<16x8xf32> to vector<2x8x8xf32>
    %73 = vector.extract_strided_slice %49 {offsets = [0, 40], sizes = [16, 8], strides = [1, 1]} : vector<16x64xf32> to vector<16x8xf32>
    %74 = vector.shape_cast %73 : vector<16x8xf32> to vector<2x8x8xf32>
    %cst_28 = arith.constant dense<0.000000e+00> : vector<2x8x8xf32>
    %75 = tpu.matmul %72, %70, %cst_28 {dimension_numbers = #tpu.dot_dimension_numbers<[2], [2], [1], [1], [0, 0, 0, 1, 1, 1], [0], [0]>} : vector<2x8x8xf32>, vector<2x8x8xf32>, vector<2x8x8xf32> -> vector<2x8x8xf32>
    %cst_29 = arith.constant 0.353553385 : f32
    %76 = vector.broadcast %cst_29 : f32 to vector<2x8x8xf32>
    %77 = arith.mulf %75, %76 : vector<2x8x8xf32>
    %cst_30 = arith.constant dense<0xFF800000> : vector<2x8xf32>
    %78 = vector.multi_reduction <maximumf>, %77, %cst_30 [1] : vector<2x8x8xf32> to vector<2x8xf32>
    %79 = vector.shape_cast %78 : vector<2x8xf32> to vector<2x1x8xf32>
    %80 = vector.broadcast %79 : vector<2x1x8xf32> to vector<2x8x8xf32>
    %81 = arith.subf %77, %80 : vector<2x8x8xf32>
    %82 = math.exp %81 : vector<2x8x8xf32>
    %cst_31 = arith.constant dense<0.000000e+00> : vector<2x8xf32>
    %83 = vector.multi_reduction <add>, %82, %cst_31 [1] : vector<2x8x8xf32> to vector<2x8xf32>
    %84 = vector.shape_cast %83 : vector<2x8xf32> to vector<2x1x8xf32>
    %85 = vector.broadcast %84 : vector<2x1x8xf32> to vector<2x8x8xf32>
    %86 = arith.divf %82, %85 : vector<2x8x8xf32>
    %87 = arith.mulf %86, %74 : vector<2x8x8xf32>
    %88 = vector.extract_strided_slice %47 {offsets = [0, 16], sizes = [16, 8], strides = [1, 1]} : vector<16x32xf32> to vector<16x8xf32>
    %89 = vector.shape_cast %88 : vector<16x8xf32> to vector<2x8x8xf32>
    %90 = vector.extract_strided_slice %49 {offsets = [0, 16], sizes = [16, 8], strides = [1, 1]} : vector<16x64xf32> to vector<16x8xf32>
    %91 = vector.shape_cast %90 : vector<16x8xf32> to vector<2x8x8xf32>
    %92 = vector.extract_strided_slice %49 {offsets = [0, 48], sizes = [16, 8], strides = [1, 1]} : vector<16x64xf32> to vector<16x8xf32>
    %93 = vector.shape_cast %92 : vector<16x8xf32> to vector<2x8x8xf32>
    %cst_32 = arith.constant dense<0.000000e+00> : vector<2x8x8xf32>
    %94 = tpu.matmul %91, %89, %cst_32 {dimension_numbers = #tpu.dot_dimension_numbers<[2], [2], [1], [1], [0, 0, 0, 1, 1, 1], [0], [0]>} : vector<2x8x8xf32>, vector<2x8x8xf32>, vector<2x8x8xf32> -> vector<2x8x8xf32>
    %cst_33 = arith.constant 0.353553385 : f32
    %95 = vector.broadcast %cst_33 : f32 to vector<2x8x8xf32>
    %96 = arith.mulf %94, %95 : vector<2x8x8xf32>
    %cst_34 = arith.constant dense<0xFF800000> : vector<2x8xf32>
    %97 = vector.multi_reduction <maximumf>, %96, %cst_34 [1] : vector<2x8x8xf32> to vector<2x8xf32>
    %98 = vector.shape_cast %97 : vector<2x8xf32> to vector<2x1x8xf32>
    %99 = vector.broadcast %98 : vector<2x1x8xf32> to vector<2x8x8xf32>
    %100 = arith.subf %96, %99 : vector<2x8x8xf32>
    %101 = math.exp %100 : vector<2x8x8xf32>
    %cst_35 = arith.constant dense<0.000000e+00> : vector<2x8xf32>
    %102 = vector.multi_reduction <add>, %101, %cst_35 [1] : vector<2x8x8xf32> to vector<2x8xf32>
    %103 = vector.shape_cast %102 : vector<2x8xf32> to vector<2x1x8xf32>
    %104 = vector.broadcast %103 : vector<2x1x8xf32> to vector<2x8x8xf32>
    %105 = arith.divf %101, %104 : vector<2x8x8xf32>
    %106 = arith.mulf %105, %93 : vector<2x8x8xf32>
    %107 = vector.extract_strided_slice %47 {offsets = [0, 24], sizes = [16, 8], strides = [1, 1]} : vector<16x32xf32> to vector<16x8xf32>
    %108 = vector.shape_cast %107 : vector<16x8xf32> to vector<2x8x8xf32>
    %109 = vector.extract_strided_slice %49 {offsets = [0, 24], sizes = [16, 8], strides = [1, 1]} : vector<16x64xf32> to vector<16x8xf32>
    %110 = vector.shape_cast %109 : vector<16x8xf32> to vector<2x8x8xf32>
    %111 = vector.extract_strided_slice %49 {offsets = [0, 56], sizes = [16, 8], strides = [1, 1]} : vector<16x64xf32> to vector<16x8xf32>
    %112 = vector.shape_cast %111 : vector<16x8xf32> to vector<2x8x8xf32>
    %cst_36 = arith.constant dense<0.000000e+00> : vector<2x8x8xf32>
    %113 = tpu.matmul %110, %108, %cst_36 {dimension_numbers = #tpu.dot_dimension_numbers<[2], [2], [1], [1], [0, 0, 0, 1, 1, 1], [0], [0]>} : vector<2x8x8xf32>, vector<2x8x8xf32>, vector<2x8x8xf32> -> vector<2x8x8xf32>
    %cst_37 = arith.constant 0.353553385 : f32
    %114 = vector.broadcast %cst_37 : f32 to vector<2x8x8xf32>
    %115 = arith.mulf %113, %114 : vector<2x8x8xf32>
    %cst_38 = arith.constant dense<0xFF800000> : vector<2x8xf32>
    %116 = vector.multi_reduction <maximumf>, %115, %cst_38 [1] : vector<2x8x8xf32> to vector<2x8xf32>
    %117 = vector.shape_cast %116 : vector<2x8xf32> to vector<2x1x8xf32>
    %118 = vector.broadcast %117 : vector<2x1x8xf32> to vector<2x8x8xf32>
    %119 = arith.subf %115, %118 : vector<2x8x8xf32>
    %120 = math.exp %119 : vector<2x8x8xf32>
    %cst_39 = arith.constant dense<0.000000e+00> : vector<2x8xf32>
    %121 = vector.multi_reduction <add>, %120, %cst_39 [1] : vector<2x8x8xf32> to vector<2x8xf32>
    %122 = vector.shape_cast %121 : vector<2x8xf32> to vector<2x1x8xf32>
    %123 = vector.broadcast %122 : vector<2x1x8xf32> to vector<2x8x8xf32>
    %124 = arith.divf %120, %123 : vector<2x8x8xf32>
    %125 = arith.mulf %124, %112 : vector<2x8x8xf32>
    %126 = tpu.concatenate %68, %87, %106, %125 in 2 : vector<2x8x8xf32>, vector<2x8x8xf32>, vector<2x8x8xf32>, vector<2x8x8xf32> -> vector<2x8x32xf32>
    %127 = vector.shape_cast %126 : vector<2x8x32xf32> to vector<16x32xf32>
    %c0_40 = arith.constant 0 : index
    %c0_41 = arith.constant 0 : index
    %128 = vector.load %arg7[%c0_40, %c0_41] : memref<32x32xf32, #tpu.memory_space<vmem>>, vector<32x32xf32>
    %cst_42 = arith.constant dense<0.000000e+00> : vector<16x32xf32>
    %129 = tpu.matmul %127, %128, %cst_42 {dimension_numbers = #tpu.dot_dimension_numbers<[1], [0], [0], [1], [0, 0, 1, 1], [], []>} : vector<16x32xf32>, vector<32x32xf32>, vector<16x32xf32> -> vector<16x32xf32>
    %c0_43 = arith.constant 0 : index
    %c0_44 = arith.constant 0 : index
    %130 = vector.load %arg8[%c0_43, %c0_44] : memref<1x32xf32, #tpu.memory_space<vmem>>, vector<1x32xf32>
    %131 = vector.broadcast %130 : vector<1x32xf32> to vector<16x32xf32>
    %132 = arith.addf %129, %131 : vector<16x32xf32>
    %c0_45 = arith.constant 0 : index
    %c0_46 = arith.constant 0 : index
    %133 = vector.load %arg9[%c0_45, %c0_46] : memref<1x32xf32, #tpu.memory_space<vmem>>, vector<1x32xf32>
    %134 = vector.broadcast %133 : vector<1x32xf32> to vector<16x32xf32>
    %135 = arith.mulf %134, %132 : vector<16x32xf32>
    %136 = arith.addf %1, %135 : vector<16x32xf32>
    %137 = vector.shape_cast %136 : vector<16x32xf32> to vector<2x8x32xf32>
    %c0_47 = arith.constant 0 : index
    %c0_48 = arith.constant 0 : index
    %c0_49 = arith.constant 0 : index
    %138 = vector.load %arg10[%c0_47, %c0_48, %c0_49] : memref<2x8x32xf32, #tpu.memory_space<vmem>>, vector<2x8x32xf32>
    tpu.vector_store %arg10[%c0_47, %c0_48, %c0_49], %137 {strides = array<i32>} : memref<2x8x32xf32, #tpu.memory_space<vmem>>, vector<2x8x32xf32>,
    return
  }
  func.func @transform_0(%arg0: i32) -> (i32, i32, i32) {
    %c0_i32 = arith.constant 0 : i32
    %c0_i32_0 = arith.constant 0 : i32
    %c0_i32_1 = arith.constant 0 : i32
    return %arg0, %c0_i32, %c0_i32_0 : i32, i32, i32
  }
  func.func @transform_1(%arg0: i32) -> (i32, i32, i32) {
    %c0_i32 = arith.constant 0 : i32
    %c0_i32_0 = arith.constant 0 : i32
    %c0_i32_1 = arith.constant 0 : i32
    return %arg0, %c0_i32, %c0_i32_0 : i32, i32, i32
  }
  func.func @transform_2(%arg0: i32) -> (i32, i32) {
    %c0_i32 = arith.constant 0 : i32
    %c0_i32_0 = arith.constant 0 : i32
    %c0_i32_1 = arith.constant 0 : i32
    return %c0_i32, %c0_i32_0 : i32, i32
  }
  func.func @transform_3(%arg0: i32) -> (i32, i32) {
    %c0_i32 = arith.constant 0 : i32
    %c0_i32_0 = arith.constant 0 : i32
    %c0_i32_1 = arith.constant 0 : i32
    return %c0_i32, %c0_i32_0 : i32, i32
  }
  func.func @transform_4(%arg0: i32) -> (i32, i32) {
    %c0_i32 = arith.constant 0 : i32
    %c0_i32_0 = arith.constant 0 : i32
    %c0_i32_1 = arith.constant 0 : i32
    return %c0_i32, %c0_i32_0 : i32, i32
  }
  func.func @transform_5(%arg0: i32) -> (i32, i32) {
    %c0_i32 = arith.constant 0 : i32
    %c0_i32_0 = arith.constant 0 : i32
    %c0_i32_1 = arith.constant 0 : i32
    return %c0_i32, %c0_i32_0 : i32, i32
  }
  func.func @transform_6(%arg0: i32) -> (i32, i32) {
    %c0_i32 = arith.constant 0 : i32
    %c0_i32_0 = arith.constant 0 : i32
    %c0_i32_1 = arith.constant 0 : i32
    return %c0_i32, %c0_i32_0 : i32, i32
  }
  func.func @transform_7(%arg0: i32) -> (i32, i32) {
    %c0_i32 = arith.constant 0 : i32
    %c0_i32_0 = arith.constant 0 : i32
    %c0_i32_1 = arith.constant 0 : i32
    return %c0_i32, %c0_i32_0 : i32, i32
  }
  func.func @transform_8(%arg0: i32) -> (i32, i32) {
    %c0_i32 = arith.constant 0 : i32
    %c0_i32_0 = arith.constant 0 : i32
    %c0_i32_1 = arith.constant 0 : i32
    return %c0_i32, %c0_i32_0 : i32, i32
  }
  func.func @transform_9(%arg0: i32) -> (i32, i32, i32) {
    %c0_i32 = arith.constant 0 : i32
    %c0_i32_0 = arith.constant 0 : i32
    %c0_i32_1 = arith.constant 0 : i32
    return %arg0, %c0_i32, %c0_i32_0 : i32, i32, i32
  }
}

</mosaic_0001>

<llo_original>
// kernel: tpu_custom_call.1
$region0: #{tpu_custom_call.1}
  #allocation0 [shape = 'u32[]', space=smem, size = 0x4, offset = 0x4, fixed_abs, tag = 'smem constant byte address 0x4 - core index']
  #allocation1 [shape = 'u32[144,128]{1,0:T(1,128)}', space=vmem, size = 0x12000, scoped, tag = 'internal scratch']
  %s0 = inlined_call_operand.hbm [shape: f32[2,8,32], index: 0, kind: input, shape index: {}]
  %s1 = inlined_call_operand.hbm [shape: f32[2,8,32], index: 1, kind: input, shape index: {}]
  %s2 = inlined_call_operand.vmem [shape: f32[1,32], index: 2, kind: input, shape index: {}]
  %s3 = inlined_call_operand.vmem [shape: f32[1,32], index: 3, kind: input, shape index: {}]
  %s4 = inlined_call_operand.hbm [shape: f32[32,32], index: 4, kind: input, shape index: {}]
  %s5 = inlined_call_operand.hbm [shape: f32[32,64], index: 5, kind: input, shape index: {}]
  %s6 = inlined_call_operand.hbm [shape: f32[32,32], index: 6, kind: input, shape index: {}]
  %s7 = inlined_call_operand.vmem [shape: f32[1,32], index: 7, kind: input, shape index: {}]
  %s8 = inlined_call_operand.vmem [shape: f32[1,32], index: 8, kind: input, shape index: {}]
  %s9 = inlined_call_operand.hbm [shape: f32[2,8,32], index: 9, kind: output, shape index: {}]
  %s10 = sld [smem:[#allocation0]]
  $region66: #{tpu_custom_call.1} parent=0
    _
  %s12 = ssub.s32 1, %s10
  %s13 = scalar_select 0, %s12, %s10
  $region1: #{tpu_custom_call.1} parent=0
    #allocation2 [shape = 'u8[8192]{0}', space=vmem, size = 0x2000, scoped, tag = 'input window, operand 0, single buffered']
    #allocation3 [shape = 's32[1]{0}', space=sflag, size = 0x4, scoped, tag = 'scoped memory for tpu_custom_call.1']
    #allocation4 [shape = 's32[1]{0}', space=sflag, size = 0x4, scoped, tag = 'scoped memory for tpu_custom_call.1']
    #allocation5 [shape = 'u8[8192]{0}', space=vmem, size = 0x2000, scoped, tag = 'input window, operand 1, single buffered']
    #allocation6 [shape = 's32[1]{0}', space=sflag, size = 0x4, scoped, tag = 'scoped memory for tpu_custom_call.1']
    #allocation7 [shape = 'u8[16384]{0}', space=vmem, size = 0x4000, scoped, tag = 'input window, operand 4, single buffered']
    #allocation8 [shape = 'u8[16384]{0}', space=vmem, size = 0x4000, scoped, tag = 'input window, operand 5, single buffered']
    #allocation9 [shape = 's32[1]{0}', space=sflag, size = 0x4, scoped, tag = 'scoped memory for tpu_custom_call.1']
    #allocation10 [shape = 'u8[16384]{0}', space=vmem, size = 0x4000, scoped, tag = 'input window, operand 6, single buffered']
    #allocation11 [shape = 'u8[8192]{0}', space=vmem, size = 0x2000, scoped, tag = 'output window, operand 0, single buffered']
    %14 = vsyncpa [#allocation3], 0
    %15 = vsyncpa [#allocation6], 0
    %16 = vsyncpa [#allocation9], 0
    %17 = vsyncpa [#allocation4], 0
    // Predicated region
    $region2: #{tpu_custom_call.1} parent=1 // pred_check
      _
    $region3: #{tpu_custom_call.1} parent=1 // pred_check_branch
      %19 = sbr.rel (0) target = $region5
    $region4: #{tpu_custom_call.1} parent=1 // pred_region
      %s21 = ssub.s32 256, 256
      %22 = vsyncadd [#allocation3], %s21
      %s23 = sshll.u32 [#allocation2], 4
      %s24 = int_to_ptr.vmem [resolvable:$true] %s23
      %29 = dma.hbm_to_vmem [thread:$0]  %s0, 256, %s24, [#allocation3], 128, 128, 8
    $region5: #{tpu_custom_call.1} parent=1 // pred_fallthru
      _
    // Predicated region
    $region6: #{tpu_custom_call.1} parent=1 // pred_check
      _
    $region7: #{tpu_custom_call.1} parent=1 // pred_check_branch
      %31 = sbr.rel (0) target = $region9
    $region8: #{tpu_custom_call.1} parent=1 // pred_region
      %s33 = ssub.s32 256, 256
      %34 = vsyncadd [#allocation6], %s33
      %s35 = sshll.u32 [#allocation5], 4
      %s36 = int_to_ptr.vmem [resolvable:$true] %s35
      %41 = dma.hbm_to_vmem [thread:$0]  %s1, 256, %s36, [#allocation6], 128, 128, 8
    $region9: #{tpu_custom_call.1} parent=1 // pred_fallthru
      _
    // Predicated region
    $region10: #{tpu_custom_call.1} parent=1 // pred_check
      _
    $region11: #{tpu_custom_call.1} parent=1 // pred_check_branch
      %43 = sbr.rel (0) target = $region13
    $region12: #{tpu_custom_call.1} parent=1 // pred_region
      _
    $region13: #{tpu_custom_call.1} parent=1 // pred_fallthru
      _
    // Predicated region
    $region14: #{tpu_custom_call.1} parent=1 // pred_check
      _
    $region15: #{tpu_custom_call.1} parent=1 // pred_check_branch
      %45 = sbr.rel (0) target = $region17
    $region16: #{tpu_custom_call.1} parent=1 // pred_region
      _
    $region17: #{tpu_custom_call.1} parent=1 // pred_fallthru
      _
    // Predicated region
    $region18: #{tpu_custom_call.1} parent=1 // pred_check
      _
    $region19: #{tpu_custom_call.1} parent=1 // pred_check_branch
      %47 = sbr.rel (0) target = $region21
    $region20: #{tpu_custom_call.1} parent=1 // pred_region
      %s49 = ssub.s32 512, 512
      %50 = vsyncadd [#allocation6], %s49
      %s51 = sshll.u32 [#allocation7], 4
      %s52 = int_to_ptr.vmem [resolvable:$true] %s51
      %57 = dma.hbm_to_vmem [thread:$0]  %s4, 512, %s52, [#allocation6], 128, 128, 8
    $region21: #{tpu_custom_call.1} parent=1 // pred_fallthru
      _
    // Predicated region
    $region22: #{tpu_custom_call.1} parent=1 // pred_check
      _
    $region23: #{tpu_custom_call.1} parent=1 // pred_check_branch
      %59 = sbr.rel (0) target = $region25
    $region24: #{tpu_custom_call.1} parent=1 // pred_region
      %s61 = ssub.s32 512, 512
      %62 = vsyncadd [#allocation9], %s61
      %s63 = sshll.u32 [#allocation8], 4
      %s64 = int_to_ptr.vmem [resolvable:$true] %s63
      %69 = dma.hbm_to_vmem [thread:$0]  %s5, 512, %s64, [#allocation9], 128, 128, 8
    $region25: #{tpu_custom_call.1} parent=1 // pred_fallthru
      _
    // Predicated region
    $region26: #{tpu_custom_call.1} parent=1 // pred_check
      _
    $region27: #{tpu_custom_call.1} parent=1 // pred_check_branch
      %71 = sbr.rel (0) target = $region29
    $region28: #{tpu_custom_call.1} parent=1 // pred_region
      %s73 = ssub.s32 512, 512
      %74 = vsyncadd [#allocation9], %s73
      %s75 = sshll.u32 [#allocation10], 4
      %s76 = int_to_ptr.vmem [resolvable:$true] %s75
      %81 = dma.hbm_to_vmem [thread:$0]  %s6, 512, %s76, [#allocation9], 128, 128, 8
    $region29: #{tpu_custom_call.1} parent=1 // pred_fallthru
      _
    // Predicated region
    $region30: #{tpu_custom_call.1} parent=1 // pred_check
      _
    $region31: #{tpu_custom_call.1} parent=1 // pred_check_branch
      %83 = sbr.rel (0) target = $region33
    $region32: #{tpu_custom_call.1} parent=1 // pred_region
      _
    $region33: #{tpu_custom_call.1} parent=1 // pred_fallthru
      _
    // Predicated region
    $region34: #{tpu_custom_call.1} parent=1 // pred_check
      _
    $region35: #{tpu_custom_call.1} parent=1 // pred_check_branch
      %85 = sbr.rel (0) target = $region37
    $region36: #{tpu_custom_call.1} parent=1 // pred_region
      _
    $region37: #{tpu_custom_call.1} parent=1 // pred_fallthru
      _
    // Predicated region
    $region38: #{tpu_custom_call.1} parent=1 // pred_check
      _
    $region39: #{tpu_custom_call.1} parent=1 // pred_check_branch
      %87 = sbr.rel (0) target = $region41
    $region40: #{tpu_custom_call.1} parent=1 // pred_region
      %88 = dma.done [#allocation3], 256
    $region41: #{tpu_custom_call.1} parent=1 // pred_fallthru
      _
    // Predicated region
    $region42: #{tpu_custom_call.1} parent=1 // pred_check
      _
    $region43: #{tpu_custom_call.1} parent=1 // pred_check_branch
      %90 = sbr.rel (0) target = $region45
    $region44: #{tpu_custom_call.1} parent=1 // pred_region
      %91 = dma.done [#allocation6], 256
    $region45: #{tpu_custom_call.1} parent=1 // pred_fallthru
      _
    // Predicated region
    $region46: #{tpu_custom_call.1} parent=1 // pred_check
      _
    $region47: #{tpu_custom_call.1} parent=1 // pred_check_branch
      %93 = sbr.rel (0) target = $region49
    $region48: #{tpu_custom_call.1} parent=1 // pred_region
      %94 = dma.done [#allocation6], 512
    $region49: #{tpu_custom_call.1} parent=1 // pred_fallthru
      _
    // Predicated region
    $region50: #{tpu_custom_call.1} parent=1 // pred_check
      _
    $region51: #{tpu_custom_call.1} parent=1 // pred_check_branch
      %96 = sbr.rel (0) target = $region53
    $region52: #{tpu_custom_call.1} parent=1 // pred_region
      %97 = dma.done [#allocation9], 512
    $region53: #{tpu_custom_call.1} parent=1 // pred_fallthru
      _
    // Predicated region
    $region54: #{tpu_custom_call.1} parent=1 // pred_check
      _
    $region55: #{tpu_custom_call.1} parent=1 // pred_check_branch
      %99 = sbr.rel (0) target = $region57
    $region56: #{tpu_custom_call.1} parent=1 // pred_region
      %100 = dma.done [#allocation9], 512
    $region57: #{tpu_custom_call.1} parent=1 // pred_fallthru
      _
    %v101 = vld [vmem:[#allocation2] sm:$0xff]
    %v102 = vld [vmem:[#allocation2 + $0x8] sm:$0xff]
    %v103 = vld [vmem:[#allocation5] sm:$0xff]
    %v104 = vld [vmem:[#allocation5 + $0x8] sm:$0xff]
    %v105 = vld [vmem:[%s2] sm:$0x1]
    %v106 = vld [vmem:[%s3] sm:$0x1]
    %vm107 = vcmask 261120
    %v108 = vsel %vm107, %v101, 0.0
    %109 = vadd.xlane.f32.xlu0 %v108
    %v110 = vpop.xlane.xlu0 %109
    %v111 = vsel %vm107, %v102, 0.0
    %112 = vadd.xlane.f32.xlu0 %v111
    %v113 = vpop.xlane.xlu0 %112
    %v114 = vrcp.pop 32.0
    %v115 = vmul.f32 %v110, %v114
    %v116 = vmul.f32 %v113, %v114
    %v117 = vsub.f32 %v101, %v115
    %v118 = vsub.f32 %v102, %v116
    %v119 = vmul.f32 %v117, %v117
    %v120 = vmul.f32 %v118, %v118
    %v121 = vsel %vm107, %v119, 0.0
    %122 = vadd.xlane.f32.xlu0 %v121
    %v123 = vpop.xlane.xlu0 %122
    %v124 = vsel %vm107, %v120, 0.0
    %125 = vadd.xlane.f32.xlu0 %v124
    %v126 = vpop.xlane.xlu0 %125
    %v127 = vmul.f32 %v123, %v114
    %v128 = vmul.f32 %v126, %v114
    %v129 = vadd.f32 %v127, 1e-05
    %v130 = vadd.f32 %v128, 1e-05
    %v131 = vrsqrt.pop %v129
    %v132 = vrsqrt.pop %v130
    %v133 = vmul.f32 %v117, %v131
    %v134 = vmul.f32 %v118, %v132
    %v136 = vlaneseq
    %v137 = vshrl.u32 %v136, 7
    %v138 = vsub.s32 0, %v137
    %v139 = vrot.slane %v105, %v138
    %v141 = vmul.f32 %v133, %v139
    %v142 = vmul.f32 %v134, %v139
    %v144 = vlaneseq
    %v145 = vshrl.u32 %v144, 7
    %v146 = vsub.s32 0, %v145
    %v147 = vrot.slane %v106, %v146
    %v149 = vadd.f32 %v141, %v147
    %v150 = vadd.f32 %v142, %v147
    %v151 = vsel %vm107, %v103, 0.0
    %152 = vadd.xlane.f32.xlu0 %v151
    %v153 = vpop.xlane.xlu0 %152
    %v154 = vsel %vm107, %v104, 0.0
    %155 = vadd.xlane.f32.xlu0 %v154
    %v156 = vpop.xlane.xlu0 %155
    %v157 = vmul.f32 %v153, %v114
    %v158 = vmul.f32 %v156, %v114
    %v159 = vsub.f32 %v103, %v157
    %v160 = vsub.f32 %v104, %v158
    %v161 = vmul.f32 %v159, %v159
    %v162 = vmul.f32 %v160, %v160
    %v163 = vsel %vm107, %v161, 0.0
    %164 = vadd.xlane.f32.xlu0 %v163
    %v165 = vpop.xlane.xlu0 %164
    %v166 = vsel %vm107, %v162, 0.0
    %167 = vadd.xlane.f32.xlu0 %v166
    %v168 = vpop.xlane.xlu0 %167
    %v169 = vmul.f32 %v165, %v114
    %v170 = vmul.f32 %v168, %v114
    %v171 = vadd.f32 %v169, 1e-05
    %v172 = vadd.f32 %v170, 1e-05
    %v173 = vrsqrt.pop %v171
    %v174 = vrsqrt.pop %v172
    %v175 = vmul.f32 %v159, %v173
    %v176 = vmul.f32 %v160, %v174
    %v177 = vmul.f32 %v175, %v139
    %v178 = vmul.f32 %v176, %v139
    %v179 = vadd.f32 %v177, %v147
    %v180 = vadd.f32 %v178, %v147
    %v181 = vld [vmem:[#allocation7] sm:$0xff]
    %v182 = vld [vmem:[#allocation7 + $0x8] sm:$0xff]
    %v183 = vld [vmem:[#allocation7 + $0x10] sm:$0xff]
    %v184 = vld [vmem:[#allocation7 + $0x18] sm:$0xff]
    %v186 = vsel %vm107, %v149, 0
    %v189 = vsel %vm107, %v150, 0
    %191 = vmatprep.subr.mxu0 0.0
    %192 = vmatpush1.msra.mxu0 %v181
    %193 = vmatprep.subr.mxu0 0.0
    %194 = vmatpush1.msra.mxu0 %v182
    %195 = vmatprep.subr.mxu0 0.0
    %196 = vmatpush1.msra.mxu0 %v183
    %197 = vmatprep.subr.mxu0 0.0
    %198 = vmatpush1.msra.mxu0 %v184
    %199 = vmatprep.subr.mxu0 0.0
    %200 = vmatpush1.msra.mxu0 0.0
    %201 = vmatprep.subr.mxu0 0.0
    %202 = vmatpush1.msra.mxu0 0.0
    %203 = vmatprep.subr.mxu0 0.0
    %204 = vmatpush1.msra.mxu0 0.0
    %205 = vmatprep.subr.mxu0 0.0
    %206 = vmatpush1.msra.mxu0 0.0
    %207 = vmatprep.subr.mxu0 0.0
    %208 = vmatpush1.msra.mxu0 0.0
    %209 = vmatprep.subr.mxu0 0.0
    %210 = vmatpush1.msra.mxu0 0.0
    %211 = vmatprep.subr.mxu0 0.0
    %212 = vmatpush1.msra.mxu0 0.0
    %213 = vmatprep.subr.mxu0 0.0
    %214 = vmatpush1.msra.mxu0 0.0
    %215 = vmatprep.subr.mxu0 0.0
    %216 = vmatpush1.msra.mxu0 0.0
    %217 = vmatprep.subr.mxu0 0.0
    %218 = vmatpush1.msra.mxu0 0.0
    %219 = vmatprep.subr.mxu0 0.0
    %220 = vmatpush1.msra.mxu0 0.0
    %221 = vmatprep.subr.mxu0 0.0
    %222 = vmatpush1.msra.mxu0 0.0
    %223 = vmatprep.subr.mxu0 0.0
    %224 = vmatpush1.msra.mxu0 0.0
    %225 = vmatprep.subr.mxu0 0.0
    %226 = vmatpush1.msra.mxu0 0.0
    %227 = vmatprep.subr.mxu0 0.0
    %228 = vmatpush1.msra.mxu0 0.0
    %229 = vmatprep.subr.mxu0 0.0
    %230 = vmatpush1.msra.mxu0 0.0
    %231 = vmatprep.subr.mxu0 0.0
    %232 = vmatpush1.msra.mxu0 0.0
    %233 = vmatprep.subr.mxu0 0.0
    %234 = vmatpush1.msra.mxu0 0.0
    %235 = vmatprep.subr.mxu0 0.0
    %236 = vmatpush1.msra.mxu0 0.0
    %237 = vmatprep.subr.mxu0 0.0
    %238 = vmatpush1.msra.mxu0 0.0
    %239 = vmatprep.subr.mxu0 0.0
    %240 = vmatpush1.msra.mxu0 0.0
    %241 = vmatprep.subr.mxu0 0.0
    %242 = vmatpush1.msra.mxu0 0.0
    %243 = vmatprep.subr.mxu0 0.0
    %244 = vmatpush1.msra.mxu0 0.0
    %245 = vmatprep.subr.mxu0 0.0
    %246 = vmatpush1.msra.mxu0 0.0
    %247 = vmatprep.subr.mxu0 0.0
    %248 = vmatpush1.msra.mxu0 0.0
    %249 = vmatprep.subr.mxu0 0.0
    %250 = vmatpush1.msra.mxu0 0.0
    %251 = vmatprep.subr.mxu0 0.0
    %252 = vmatpush1.msra.mxu0 0.0
    %253 = vmatprep.subr.mxu0 0.0
    %254 = vmatpush1.msra.mxu0 0.0
    %255 = vmatprep.mubr.f32.mxu0 0.0
    %256 = vmatmul.mubr.f32.gmra.mrb[0].mxu0 %v186
    %v257 = vpop.f32.mrb[0].mxu0
    %v258 = vadd.f32 0.0, %v257
    %v259 = vpop.f32.mrb[0].mxu0
    %260 = vmatprep.mubr.f32.mxu0 0.0
    %261 = vmatmul.mubr.f32.gmra.mrb[0].mxu0 %v189
    %v262 = vpop.f32.mrb[0].mxu0
    %v263 = vadd.f32 0.0, %v262
    %v264 = vpop.f32.mrb[0].mxu0
    %265 = vdwg.mxu0
    %v266 = vld [vmem:[#allocation8] sm:$0xff]
    %v267 = vld [vmem:[#allocation8 + $0x8] sm:$0xff]
    %v268 = vld [vmem:[#allocation8 + $0x10] sm:$0xff]
    %v269 = vld [vmem:[#allocation8 + $0x18] sm:$0xff]
    %v271 = vsel %vm107, %v179, 0
    %v274 = vsel %vm107, %v180, 0
    %276 = vmatprep.subr.mxu0 0.0
    %277 = vmatpush1.msra.mxu0 %v266
    %278 = vmatprep.subr.mxu0 0.0
    %279 = vmatpush1.msra.mxu0 %v267
    %280 = vmatprep.subr.mxu0 0.0
    %281 = vmatpush1.msra.mxu0 %v268
    %282 = vmatprep.subr.mxu0 0.0
    %283 = vmatpush1.msra.mxu0 %v269
    %284 = vmatprep.subr.mxu0 0.0
    %285 = vmatpush1.msra.mxu0 0.0
    %286 = vmatprep.subr.mxu0 0.0
    %287 = vmatpush1.msra.mxu0 0.0
    %288 = vmatprep.subr.mxu0 0.0
    %289 = vmatpush1.msra.mxu0 0.0
    %290 = vmatprep.subr.mxu0 0.0
    %291 = vmatpush1.msra.mxu0 0.0
    %292 = vmatprep.subr.mxu0 0.0
    %293 = vmatpush1.msra.mxu0 0.0
    %294 = vmatprep.subr.mxu0 0.0
    %295 = vmatpush1.msra.mxu0 0.0
    %296 = vmatprep.subr.mxu0 0.0
    %297 = vmatpush1.msra.mxu0 0.0
    %298 = vmatprep.subr.mxu0 0.0
    %299 = vmatpush1.msra.mxu0 0.0
    %300 = vmatprep.subr.mxu0 0.0
    %301 = vmatpush1.msra.mxu0 0.0
    %302 = vmatprep.subr.mxu0 0.0
    %303 = vmatpush1.msra.mxu0 0.0
    %304 = vmatprep.subr.mxu0 0.0
    %305 = vmatpush1.msra.mxu0 0.0
    %306 = vmatprep.subr.mxu0 0.0
    %307 = vmatpush1.msra.mxu0 0.0
    %308 = vmatprep.subr.mxu0 0.0
    %309 = vmatpush1.msra.mxu0 0.0
    %310 = vmatprep.subr.mxu0 0.0
    %311 = vmatpush1.msra.mxu0 0.0
    %312 = vmatprep.subr.mxu0 0.0
    %313 = vmatpush1.msra.mxu0 0.0
    %314 = vmatprep.subr.mxu0 0.0
    %315 = vmatpush1.msra.mxu0 0.0
    %316 = vmatprep.subr.mxu0 0.0
    %317 = vmatpush1.msra.mxu0 0.0
    %318 = vmatprep.subr.mxu0 0.0
    %319 = vmatpush1.msra.mxu0 0.0
    %320 = vmatprep.subr.mxu0 0.0
    %321 = vmatpush1.msra.mxu0 0.0
    %322 = vmatprep.subr.mxu0 0.0
    %323 = vmatpush1.msra.mxu0 0.0
    %324 = vmatprep.subr.mxu0 0.0
    %325 = vmatpush1.msra.mxu0 0.0
    %326 = vmatprep.subr.mxu0 0.0
    %327 = vmatpush1.msra.mxu0 0.0
    %328 = vmatprep.subr.mxu0 0.0
    %329 = vmatpush1.msra.mxu0 0.0
    %330 = vmatprep.subr.mxu0 0.0
    %331 = vmatpush1.msra.mxu0 0.0
    %332 = vmatprep.subr.mxu0 0.0
    %333 = vmatpush1.msra.mxu0 0.0
    %334 = vmatprep.subr.mxu0 0.0
    %335 = vmatpush1.msra.mxu0 0.0
    %336 = vmatprep.subr.mxu0 0.0
    %337 = vmatpush1.msra.mxu0 0.0
    %338 = vmatprep.subr.mxu0 0.0
    %339 = vmatpush1.msra.mxu0 0.0
    %340 = vmatprep.mubr.f32.mxu0 0.0
    %341 = vmatmul.mubr.f32.gmra.mrb[0].mxu0 %v271
    %v342 = vpop.f32.mrb[0].mxu0
    %v343 = vadd.f32 0.0, %v342
    %v344 = vpop.f32.mrb[0].mxu0
    %345 = vmatprep.mubr.f32.mxu0 0.0
    %346 = vmatmul.mubr.f32.gmra.mrb[0].mxu0 %v274
    %v347 = vpop.f32.mrb[0].mxu0
    %v348 = vadd.f32 0.0, %v347
    %v349 = vpop.f32.mrb[0].mxu0
    %350 = vdwg.mxu0
    %vm351 = vcmask 64512
    %v353 = vsel %vm351, %v343, 0
    %v356 = vsel %vm351, %v258, 0
    %358 = vmatprep.subr.mxu0 0.0
    %359 = vmatpush1.xpose.msra.mxu0 %v356
    %360 = vmatprep.subr.mxu0 0.0
    %361 = vmatpush1.xpose.msra.mxu0 0.0
    %362 = vmatprep.subr.mxu0 0.0
    %363 = vmatpush1.xpose.msra.mxu0 0.0
    %364 = vmatprep.subr.mxu0 0.0
    %365 = vmatpush1.xpose.msra.mxu0 0.0
    %366 = vmatprep.subr.mxu0 0.0
    %367 = vmatpush1.xpose.msra.mxu0 0.0
    %368 = vmatprep.subr.mxu0 0.0
    %369 = vmatpush1.xpose.msra.mxu0 0.0
    %370 = vmatprep.subr.mxu0 0.0
    %371 = vmatpush1.xpose.msra.mxu0 0.0
    %372 = vmatprep.subr.mxu0 0.0
    %373 = vmatpush1.xpose.msra.mxu0 0.0
    %374 = vmatprep.subr.mxu0 0.0
    %375 = vmatpush1.xpose.msra.mxu0 0.0
    %376 = vmatprep.subr.mxu0 0.0
    %377 = vmatpush1.xpose.msra.mxu0 0.0
    %378 = vmatprep.subr.mxu0 0.0
    %379 = vmatpush1.xpose.msra.mxu0 0.0
    %380 = vmatprep.subr.mxu0 0.0
    %381 = vmatpush1.xpose.msra.mxu0 0.0
    %382 = vmatprep.subr.mxu0 0.0
    %383 = vmatpush1.xpose.msra.mxu0 0.0
    %384 = vmatprep.subr.mxu0 0.0
    %385 = vmatpush1.xpose.msra.mxu0 0.0
    %386 = vmatprep.subr.mxu0 0.0
    %387 = vmatpush1.xpose.msra.mxu0 0.0
    %388 = vmatprep.subr.mxu0 0.0
    %389 = vmatpush1.xpose.msra.mxu0 0.0
    %390 = vmatprep.subr.mxu0 0.0
    %391 = vmatpush1.xpose.msra.mxu0 0.0
    %392 = vmatprep.subr.mxu0 0.0
    %393 = vmatpush1.xpose.msra.mxu0 0.0
    %394 = vmatprep.subr.mxu0 0.0
    %395 = vmatpush1.xpose.msra.mxu0 0.0
    %396 = vmatprep.subr.mxu0 0.0
    %397 = vmatpush1.xpose.msra.mxu0 0.0
    %398 = vmatprep.subr.mxu0 0.0
    %399 = vmatpush1.xpose.msra.mxu0 0.0
    %400 = vmatprep.subr.mxu0 0.0
    %401 = vmatpush1.xpose.msra.mxu0 0.0
    %402 = vmatprep.subr.mxu0 0.0
    %403 = vmatpush1.xpose.msra.mxu0 0.0
    %404 = vmatprep.subr.mxu0 0.0
    %405 = vmatpush1.xpose.msra.mxu0 0.0
    %406 = vmatprep.subr.mxu0 0.0
    %407 = vmatpush1.xpose.msra.mxu0 0.0
    %408 = vmatprep.subr.mxu0 0.0
    %409 = vmatpush1.xpose.msra.mxu0 0.0
    %410 = vmatprep.subr.mxu0 0.0
    %411 = vmatpush1.xpose.msra.mxu0 0.0
    %412 = vmatprep.subr.mxu0 0.0
    %413 = vmatpush1.xpose.msra.mxu0 0.0
    %414 = vmatprep.subr.mxu0 0.0
    %415 = vmatpush1.xpose.msra.mxu0 0.0
    %416 = vmatprep.subr.mxu0 0.0
    %417 = vmatpush1.xpose.msra.mxu0 0.0
    %418 = vmatprep.subr.mxu0 0.0
    %419 = vmatpush1.xpose.msra.mxu0 0.0
    %420 = vmatprep.subr.mxu0 0.0
    %421 = vmatpush1.xpose.msra.mxu0 0.0
    %422 = vmatprep.mubr.f32.mxu0 0.0
    %423 = vmatmul.mubr.f32.gmra.mrb[0].mxu0 %v353
    %v424 = vpop.f32.mrb[0].mxu0
    %v425 = vadd.f32 0.0, %v424
    %v426 = vpop.f32.mrb[0].mxu0
    %427 = vdwg.mxu0
    %v429 = vsel %vm351, %v348, 0
    %v432 = vsel %vm351, %v263, 0
    %434 = vmatprep.subr.mxu0 0.0
    %435 = vmatpush1.xpose.msra.mxu0 %v432
    %436 = vmatprep.subr.mxu0 0.0
    %437 = vmatpush1.xpose.msra.mxu0 0.0
    %438 = vmatprep.subr.mxu0 0.0
    %439 = vmatpush1.xpose.msra.mxu0 0.0
    %440 = vmatprep.subr.mxu0 0.0
    %441 = vmatpush1.xpose.msra.mxu0 0.0
    %442 = vmatprep.subr.mxu0 0.0
    %443 = vmatpush1.xpose.msra.mxu0 0.0
    %444 = vmatprep.subr.mxu0 0.0
    %445 = vmatpush1.xpose.msra.mxu0 0.0
    %446 = vmatprep.subr.mxu0 0.0
    %447 = vmatpush1.xpose.msra.mxu0 0.0
    %448 = vmatprep.subr.mxu0 0.0
    %449 = vmatpush1.xpose.msra.mxu0 0.0
    %450 = vmatprep.subr.mxu0 0.0
    %451 = vmatpush1.xpose.msra.mxu0 0.0
    %452 = vmatprep.subr.mxu0 0.0
    %453 = vmatpush1.xpose.msra.mxu0 0.0
    %454 = vmatprep.subr.mxu0 0.0
    %455 = vmatpush1.xpose.msra.mxu0 0.0
    %456 = vmatprep.subr.mxu0 0.0
    %457 = vmatpush1.xpose.msra.mxu0 0.0
    %458 = vmatprep.subr.mxu0 0.0
    %459 = vmatpush1.xpose.msra.mxu0 0.0
    %460 = vmatprep.subr.mxu0 0.0
    %461 = vmatpush1.xpose.msra.mxu0 0.0
    %462 = vmatprep.subr.mxu0 0.0
    %463 = vmatpush1.xpose.msra.mxu0 0.0
    %464 = vmatprep.subr.mxu0 0.0
    %465 = vmatpush1.xpose.msra.mxu0 0.0
    %466 = vmatprep.subr.mxu0 0.0
    %467 = vmatpush1.xpose.msra.mxu0 0.0
    %468 = vmatprep.subr.mxu0 0.0
    %469 = vmatpush1.xpose.msra.mxu0 0.0
    %470 = vmatprep.subr.mxu0 0.0
    %471 = vmatpush1.xpose.msra.mxu0 0.0
    %472 = vmatprep.subr.mxu0 0.0
    %473 = vmatpush1.xpose.msra.mxu0 0.0
    %474 = vmatprep.subr.mxu0 0.0
    %475 = vmatpush1.xpose.msra.mxu0 0.0
    %476 = vmatprep.subr.mxu0 0.0
    %477 = vmatpush1.xpose.msra.mxu0 0.0
    %478 = vmatprep.subr.mxu0 0.0
    %479 = vmatpush1.xpose.msra.mxu0 0.0
    %480 = vmatprep.subr.mxu0 0.0
    %481 = vmatpush1.xpose.msra.mxu0 0.0
    %482 = vmatprep.subr.mxu0 0.0
    %483 = vmatpush1.xpose.msra.mxu0 0.0
    %484 = vmatprep.subr.mxu0 0.0
    %485 = vmatpush1.xpose.msra.mxu0 0.0
    %486 = vmatprep.subr.mxu0 0.0
    %487 = vmatpush1.xpose.msra.mxu0 0.0
    %488 = vmatprep.subr.mxu0 0.0
    %489 = vmatpush1.xpose.msra.mxu0 0.0
    %490 = vmatprep.subr.mxu0 0.0
    %491 = vmatpush1.xpose.msra.mxu0 0.0
    %492 = vmatprep.subr.mxu0 0.0
    %493 = vmatpush1.xpose.msra.mxu0 0.0
    %494 = vmatprep.subr.mxu0 0.0
    %495 = vmatpush1.xpose.msra.mxu0 0.0
    %496 = vmatprep.subr.mxu0 0.0
    %497 = vmatpush1.xpose.msra.mxu0 0.0
    %498 = vmatprep.mubr.f32.mxu0 0.0
    %499 = vmatmul.mubr.f32.gmra.mrb[0].mxu0 %v429
    %v500 = vpop.f32.mrb[0].mxu0
    %v501 = vadd.f32 0.0, %v500
    %v502 = vpop.f32.mrb[0].mxu0
    %503 = vdwg.mxu0
    %v504 = vmul.f32 %v425, 0.35355338
    %v505 = vmul.f32 %v501, 0.35355338
    %v506 = vsel %vm351, %v504, -inf
    %v507 = vrot.slane %v506, 4
    %v508 = vmax.f32 %v506, %v507
    %v509 = vrot.slane %v508, 2
    %v510 = vmax.f32 %v508, %v509
    %v511 = vrot.slane %v510, 1
    %v512 = vmax.f32 %v510, %v511
    %v513 = vsel %vm351, %v505, -inf
    %v514 = vrot.slane %v513, 4
    %v515 = vmax.f32 %v513, %v514
    %v516 = vrot.slane %v515, 2
    %v517 = vmax.f32 %v515, %v516
    %v518 = vrot.slane %v517, 1
    %v519 = vmax.f32 %v517, %v518
    %v520 = vsub.f32 %v504, %v512
    %v521 = vsub.f32 %v505, %v519
    %v522 = vmul.f32 %v520, 1.442695
    %v523 = vpow.pop %v522
    %v524 = vmul.f32 %v521, 1.442695
    %v525 = vpow.pop %v524
    %v526 = vsel %vm351, %v523, 0.0
    %v527 = vrot.slane %v526, 4
    %v528 = vadd.f32 %v526, %v527
    %v529 = vrot.slane %v528, 2
    %v530 = vadd.f32 %v528, %v529
    %v531 = vrot.slane %v530, 1
    %v532 = vadd.f32 %v530, %v531
    %v533 = vsel %vm351, %v525, 0.0
    %v534 = vrot.slane %v533, 4
    %v535 = vadd.f32 %v533, %v534
    %v536 = vrot.slane %v535, 2
    %v537 = vadd.f32 %v535, %v536
    %v538 = vrot.slane %v537, 1
    %v539 = vadd.f32 %v537, %v538
    %v540 = vrcp.pop %v532
    %v541 = vmul.f32 %v523, %v540
    %v542 = vrcp.pop %v539
    %v543 = vmul.f32 %v525, %v542
    %544 = vrot.lane.b32.xlu0 %v343, 96
    %v545 = vpop.permute.xlu0 %544
    %546 = vrot.lane.b32.xlu0 %v348, 96
    %v547 = vpop.permute.xlu0 %546
    %v550 = vmul.f32 %v541, %v545
    %v551 = vmul.f32 %v543, %v547
    %552 = vrot.lane.b32.xlu0 %v343, 120
    %v553 = vpop.permute.xlu0 %552
    %554 = vrot.lane.b32.xlu0 %v258, 120
    %v555 = vpop.permute.xlu0 %554
    %v556 = vsel %vm351, %v553, 0
    %v558 = vsel %vm351, %v555, 0
    %560 = vmatprep.subr.mxu0 0.0
    %561 = vmatpush1.xpose.msra.mxu0 %v558
    %562 = vmatprep.subr.mxu0 0.0
    %563 = vmatpush1.xpose.msra.mxu0 0.0
    %564 = vmatprep.subr.mxu0 0.0
    %565 = vmatpush1.xpose.msra.mxu0 0.0
    %566 = vmatprep.subr.mxu0 0.0
    %567 = vmatpush1.xpose.msra.mxu0 0.0
    %568 = vmatprep.subr.mxu0 0.0
    %569 = vmatpush1.xpose.msra.mxu0 0.0
    %570 = vmatprep.subr.mxu0 0.0
    %571 = vmatpush1.xpose.msra.mxu0 0.0
    %572 = vmatprep.subr.mxu0 0.0
    %573 = vmatpush1.xpose.msra.mxu0 0.0
    %574 = vmatprep.subr.mxu0 0.0
    %575 = vmatpush1.xpose.msra.mxu0 0.0
    %576 = vmatprep.subr.mxu0 0.0
    %577 = vmatpush1.xpose.msra.mxu0 0.0
    %578 = vmatprep.subr.mxu0 0.0
    %579 = vmatpush1.xpose.msra.mxu0 0.0
    %580 = vmatprep.subr.mxu0 0.0
    %581 = vmatpush1.xpose.msra.mxu0 0.0
    %582 = vmatprep.subr.mxu0 0.0
    %583 = vmatpush1.xpose.msra.mxu0 0.0
    %584 = vmatprep.subr.mxu0 0.0
    %585 = vmatpush1.xpose.msra.mxu0 0.0
    %586 = vmatprep.subr.mxu0 0.0
    %587 = vmatpush1.xpose.msra.mxu0 0.0
    %588 = vmatprep.subr.mxu0 0.0
    %589 = vmatpush1.xpose.msra.mxu0 0.0
    %590 = vmatprep.subr.mxu0 0.0
    %591 = vmatpush1.xpose.msra.mxu0 0.0
    %592 = vmatprep.subr.mxu0 0.0
    %593 = vmatpush1.xpose.msra.mxu0 0.0
    %594 = vmatprep.subr.mxu0 0.0
    %595 = vmatpush1.xpose.msra.mxu0 0.0
    %596 = vmatprep.subr.mxu0 0.0
    %597 = vmatpush1.xpose.msra.mxu0 0.0
    %598 = vmatprep.subr.mxu0 0.0
    %599 = vmatpush1.xpose.msra.mxu0 0.0
    %600 = vmatprep.subr.mxu0 0.0
    %601 = vmatpush1.xpose.msra.mxu0 0.0
    %602 = vmatprep.subr.mxu0 0.0
    %603 = vmatpush1.xpose.msra.mxu0 0.0
    %604 = vmatprep.subr.mxu0 0.0
    %605 = vmatpush1.xpose.msra.mxu0 0.0
    %606 = vmatprep.subr.mxu0 0.0
    %607 = vmatpush1.xpose.msra.mxu0 0.0
    %608 = vmatprep.subr.mxu0 0.0
    %609 = vmatpush1.xpose.msra.mxu0 0.0
    %610 = vmatprep.subr.mxu0 0.0
    %611 = vmatpush1.xpose.msra.mxu0 0.0
    %612 = vmatprep.subr.mxu0 0.0
    %613 = vmatpush1.xpose.msra.mxu0 0.0
    %614 = vmatprep.subr.mxu0 0.0
    %615 = vmatpush1.xpose.msra.mxu0 0.0
    %616 = vmatprep.subr.mxu0 0.0
    %617 = vmatpush1.xpose.msra.mxu0 0.0
    %618 = vmatprep.subr.mxu0 0.0
    %619 = vmatpush1.xpose.msra.mxu0 0.0
    %620 = vmatprep.subr.mxu0 0.0
    %621 = vmatpush1.xpose.msra.mxu0 0.0
    %622 = vmatprep.subr.mxu0 0.0
    %623 = vmatpush1.xpose.msra.mxu0 0.0
    %624 = vmatprep.mubr.f32.mxu0 0.0
    %625 = vmatmul.mubr.f32.gmra.mrb[0].mxu0 %v556
    %v626 = vpop.f32.mrb[0].mxu0
    %v627 = vadd.f32 0.0, %v626
    %v628 = vpop.f32.mrb[0].mxu0
    %629 = vdwg.mxu0
    %630 = vrot.lane.b32.xlu0 %v348, 120
    %v631 = vpop.permute.xlu0 %630
    %632 = vrot.lane.b32.xlu0 %v263, 120
    %v633 = vpop.permute.xlu0 %632
    %v634 = vsel %vm351, %v631, 0
    %v636 = vsel %vm351, %v633, 0
    %638 = vmatprep.subr.mxu0 0.0
    %639 = vmatpush1.xpose.msra.mxu0 %v636
    %640 = vmatprep.subr.mxu0 0.0
    %641 = vmatpush1.xpose.msra.mxu0 0.0
    %642 = vmatprep.subr.mxu0 0.0
    %643 = vmatpush1.xpose.msra.mxu0 0.0
    %644 = vmatprep.subr.mxu0 0.0
    %645 = vmatpush1.xpose.msra.mxu0 0.0
    %646 = vmatprep.subr.mxu0 0.0
    %647 = vmatpush1.xpose.msra.mxu0 0.0
    %648 = vmatprep.subr.mxu0 0.0
    %649 = vmatpush1.xpose.msra.mxu0 0.0
    %650 = vmatprep.subr.mxu0 0.0
    %651 = vmatpush1.xpose.msra.mxu0 0.0
    %652 = vmatprep.subr.mxu0 0.0
    %653 = vmatpush1.xpose.msra.mxu0 0.0
    %654 = vmatprep.subr.mxu0 0.0
    %655 = vmatpush1.xpose.msra.mxu0 0.0
    %656 = vmatprep.subr.mxu0 0.0
    %657 = vmatpush1.xpose.msra.mxu0 0.0
    %658 = vmatprep.subr.mxu0 0.0
    %659 = vmatpush1.xpose.msra.mxu0 0.0
    %660 = vmatprep.subr.mxu0 0.0
    %661 = vmatpush1.xpose.msra.mxu0 0.0
    %662 = vmatprep.subr.mxu0 0.0
    %663 = vmatpush1.xpose.msra.mxu0 0.0
    %664 = vmatprep.subr.mxu0 0.0
    %665 = vmatpush1.xpose.msra.mxu0 0.0
    %666 = vmatprep.subr.mxu0 0.0
    %667 = vmatpush1.xpose.msra.mxu0 0.0
    %668 = vmatprep.subr.mxu0 0.0
    %669 = vmatpush1.xpose.msra.mxu0 0.0
    %670 = vmatprep.subr.mxu0 0.0
    %671 = vmatpush1.xpose.msra.mxu0 0.0
    %672 = vmatprep.subr.mxu0 0.0
    %673 = vmatpush1.xpose.msra.mxu0 0.0
    %674 = vmatprep.subr.mxu0 0.0
    %675 = vmatpush1.xpose.msra.mxu0 0.0
    %676 = vmatprep.subr.mxu0 0.0
    %677 = vmatpush1.xpose.msra.mxu0 0.0
    %678 = vmatprep.subr.mxu0 0.0
    %679 = vmatpush1.xpose.msra.mxu0 0.0
    %680 = vmatprep.subr.mxu0 0.0
    %681 = vmatpush1.xpose.msra.mxu0 0.0
    %682 = vmatprep.subr.mxu0 0.0
    %683 = vmatpush1.xpose.msra.mxu0 0.0
    %684 = vmatprep.subr.mxu0 0.0
    %685 = vmatpush1.xpose.msra.mxu0 0.0
    %686 = vmatprep.subr.mxu0 0.0
    %687 = vmatpush1.xpose.msra.mxu0 0.0
    %688 = vmatprep.subr.mxu0 0.0
    %689 = vmatpush1.xpose.msra.mxu0 0.0
    %690 = vmatprep.subr.mxu0 0.0
    %691 = vmatpush1.xpose.msra.mxu0 0.0
    %692 = vmatprep.subr.mxu0 0.0
    %693 = vmatpush1.xpose.msra.mxu0 0.0
    %694 = vmatprep.subr.mxu0 0.0
    %695 = vmatpush1.xpose.msra.mxu0 0.0
    %696 = vmatprep.subr.mxu0 0.0
    %697 = vmatpush1.xpose.msra.mxu0 0.0
    %698 = vmatprep.subr.mxu0 0.0
    %699 = vmatpush1.xpose.msra.mxu0 0.0
    %700 = vmatprep.subr.mxu0 0.0
    %701 = vmatpush1.xpose.msra.mxu0 0.0
    %702 = vmatprep.mubr.f32.mxu0 0.0
    %703 = vmatmul.mubr.f32.gmra.mrb[0].mxu0 %v634
    %v704 = vpop.f32.mrb[0].mxu0
    %v705 = vadd.f32 0.0, %v704
    %v706 = vpop.f32.mrb[0].mxu0
    %707 = vdwg.mxu0
    %v708 = vmul.f32 %v627, 0.35355338
    %v709 = vmul.f32 %v705, 0.35355338
    %v710 = vsel %vm351, %v708, -inf
    %v711 = vrot.slane %v710, 4
    %v712 = vmax.f32 %v710, %v711
    %v713 = vrot.slane %v712, 2
    %v714 = vmax.f32 %v712, %v713
    %v715 = vrot.slane %v714, 1
    %v716 = vmax.f32 %v714, %v715
    %v717 = vsel %vm351, %v709, -inf
    %v718 = vrot.slane %v717, 4
    %v719 = vmax.f32 %v717, %v718
    %v720 = vrot.slane %v719, 2
    %v721 = vmax.f32 %v719, %v720
    %v722 = vrot.slane %v721, 1
    %v723 = vmax.f32 %v721, %v722
    %v724 = vsub.f32 %v708, %v716
    %v725 = vsub.f32 %v709, %v723
    %v726 = vmul.f32 %v724, 1.442695
    %v727 = vpow.pop %v726
    %v728 = vmul.f32 %v725, 1.442695
    %v729 = vpow.pop %v728
    %v730 = vsel %vm351, %v727, 0.0
    %v731 = vrot.slane %v730, 4
    %v732 = vadd.f32 %v730, %v731
    %v733 = vrot.slane %v732, 2
    %v734 = vadd.f32 %v732, %v733
    %v735 = vrot.slane %v734, 1
    %v736 = vadd.f32 %v734, %v735
    %v737 = vsel %vm351, %v729, 0.0
    %v738 = vrot.slane %v737, 4
    %v739 = vadd.f32 %v737, %v738
    %v740 = vrot.slane %v739, 2
    %v741 = vadd.f32 %v739, %v740
    %v742 = vrot.slane %v741, 1
    %v743 = vadd.f32 %v741, %v742
    %v744 = vrcp.pop %v736
    %v745 = vmul.f32 %v727, %v744
    %v746 = vrcp.pop %v743
    %v747 = vmul.f32 %v729, %v746
    %748 = vrot.lane.b32.xlu0 %v343, 88
    %v749 = vpop.permute.xlu0 %748
    %750 = vrot.lane.b32.xlu0 %v348, 88
    %v751 = vpop.permute.xlu0 %750
    %v754 = vmul.f32 %v745, %v749
    %v755 = vmul.f32 %v747, %v751
    %756 = vrot.lane.b32.xlu0 %v343, 112
    %v757 = vpop.permute.xlu0 %756
    %758 = vrot.lane.b32.xlu0 %v258, 112
    %v759 = vpop.permute.xlu0 %758
    %v760 = vsel %vm351, %v757, 0
    %v762 = vsel %vm351, %v759, 0
    %764 = vmatprep.subr.mxu0 0.0
    %765 = vmatpush1.xpose.msra.mxu0 %v762
    %766 = vmatprep.subr.mxu0 0.0
    %767 = vmatpush1.xpose.msra.mxu0 0.0
    %768 = vmatprep.subr.mxu0 0.0
    %769 = vmatpush1.xpose.msra.mxu0 0.0
    %770 = vmatprep.subr.mxu0 0.0
    %771 = vmatpush1.xpose.msra.mxu0 0.0
    %772 = vmatprep.subr.mxu0 0.0
    %773 = vmatpush1.xpose.msra.mxu0 0.0
    %774 = vmatprep.subr.mxu0 0.0
    %775 = vmatpush1.xpose.msra.mxu0 0.0
    %776 = vmatprep.subr.mxu0 0.0
    %777 = vmatpush1.xpose.msra.mxu0 0.0
    %778 = vmatprep.subr.mxu0 0.0
    %779 = vmatpush1.xpose.msra.mxu0 0.0
    %780 = vmatprep.subr.mxu0 0.0
    %781 = vmatpush1.xpose.msra.mxu0 0.0
    %782 = vmatprep.subr.mxu0 0.0
    %783 = vmatpush1.xpose.msra.mxu0 0.0
    %784 = vmatprep.subr.mxu0 0.0
    %785 = vmatpush1.xpose.msra.mxu0 0.0
    %786 = vmatprep.subr.mxu0 0.0
    %787 = vmatpush1.xpose.msra.mxu0 0.0
    %788 = vmatprep.subr.mxu0 0.0
    %789 = vmatpush1.xpose.msra.mxu0 0.0
    %790 = vmatprep.subr.mxu0 0.0
    %791 = vmatpush1.xpose.msra.mxu0 0.0
    %792 = vmatprep.subr.mxu0 0.0
    %793 = vmatpush1.xpose.msra.mxu0 0.0
    %794 = vmatprep.subr.mxu0 0.0
    %795 = vmatpush1.xpose.msra.mxu0 0.0
    %796 = vmatprep.subr.mxu0 0.0
    %797 = vmatpush1.xpose.msra.mxu0 0.0
    %798 = vmatprep.subr.mxu0 0.0
    %799 = vmatpush1.xpose.msra.mxu0 0.0
    %800 = vmatprep.subr.mxu0 0.0
    %801 = vmatpush1.xpose.msra.mxu0 0.0
    %802 = vmatprep.subr.mxu0 0.0
    %803 = vmatpush1.xpose.msra.mxu0 0.0
    %804 = vmatprep.subr.mxu0 0.0
    %805 = vmatpush1.xpose.msra.mxu0 0.0
    %806 = vmatprep.subr.mxu0 0.0
    %807 = vmatpush1.xpose.msra.mxu0 0.0
    %808 = vmatprep.subr.mxu0 0.0
    %809 = vmatpush1.xpose.msra.mxu0 0.0
    %810 = vmatprep.subr.mxu0 0.0
    %811 = vmatpush1.xpose.msra.mxu0 0.0
    %812 = vmatprep.subr.mxu0 0.0
    %813 = vmatpush1.xpose.msra.mxu0 0.0
    %814 = vmatprep.subr.mxu0 0.0
    %815 = vmatpush1.xpose.msra.mxu0 0.0
    %816 = vmatprep.subr.mxu0 0.0
    %817 = vmatpush1.xpose.msra.mxu0 0.0
    %818 = vmatprep.subr.mxu0 0.0
    %819 = vmatpush1.xpose.msra.mxu0 0.0
    %820 = vmatprep.subr.mxu0 0.0
    %821 = vmatpush1.xpose.msra.mxu0 0.0
    %822 = vmatprep.subr.mxu0 0.0
    %823 = vmatpush1.xpose.msra.mxu0 0.0
    %824 = vmatprep.subr.mxu0 0.0
    %825 = vmatpush1.xpose.msra.mxu0 0.0
    %826 = vmatprep.subr.mxu0 0.0
    %827 = vmatpush1.xpose.msra.mxu0 0.0
    %828 = vmatprep.mubr.f32.mxu0 0.0
    %829 = vmatmul.mubr.f32.gmra.mrb[0].mxu0 %v760
    %v830 = vpop.f32.mrb[0].mxu0
    %v831 = vadd.f32 0.0, %v830
    %v832 = vpop.f32.mrb[0].mxu0
    %833 = vdwg.mxu0
    %834 = vrot.lane.b32.xlu0 %v348, 112
    %v835 = vpop.permute.xlu0 %834
    %836 = vrot.lane.b32.xlu0 %v263, 112
    %v837 = vpop.permute.xlu0 %836
    %v838 = vsel %vm351, %v835, 0
    %v840 = vsel %vm351, %v837, 0
    %842 = vmatprep.subr.mxu0 0.0
    %843 = vmatpush1.xpose.msra.mxu0 %v840
    %844 = vmatprep.subr.mxu0 0.0
    %845 = vmatpush1.xpose.msra.mxu0 0.0
    %846 = vmatprep.subr.mxu0 0.0
    %847 = vmatpush1.xpose.msra.mxu0 0.0
    %848 = vmatprep.subr.mxu0 0.0
    %849 = vmatpush1.xpose.msra.mxu0 0.0
    %850 = vmatprep.subr.mxu0 0.0
    %851 = vmatpush1.xpose.msra.mxu0 0.0
    %852 = vmatprep.subr.mxu0 0.0
    %853 = vmatpush1.xpose.msra.mxu0 0.0
    %854 = vmatprep.subr.mxu0 0.0
    %855 = vmatpush1.xpose.msra.mxu0 0.0
    %856 = vmatprep.subr.mxu0 0.0
    %857 = vmatpush1.xpose.msra.mxu0 0.0
    %858 = vmatprep.subr.mxu0 0.0
    %859 = vmatpush1.xpose.msra.mxu0 0.0
    %860 = vmatprep.subr.mxu0 0.0
    %861 = vmatpush1.xpose.msra.mxu0 0.0
    %862 = vmatprep.subr.mxu0 0.0
    %863 = vmatpush1.xpose.msra.mxu0 0.0
    %864 = vmatprep.subr.mxu0 0.0
    %865 = vmatpush1.xpose.msra.mxu0 0.0
    %866 = vmatprep.subr.mxu0 0.0
    %867 = vmatpush1.xpose.msra.mxu0 0.0
    %868 = vmatprep.subr.mxu0 0.0
    %869 = vmatpush1.xpose.msra.mxu0 0.0
    %870 = vmatprep.subr.mxu0 0.0
    %871 = vmatpush1.xpose.msra.mxu0 0.0
    %872 = vmatprep.subr.mxu0 0.0
    %873 = vmatpush1.xpose.msra.mxu0 0.0
    %874 = vmatprep.subr.mxu0 0.0
    %875 = vmatpush1.xpose.msra.mxu0 0.0
    %876 = vmatprep.subr.mxu0 0.0
    %877 = vmatpush1.xpose.msra.mxu0 0.0
    %878 = vmatprep.subr.mxu0 0.0
    %879 = vmatpush1.xpose.msra.mxu0 0.0
    %880 = vmatprep.subr.mxu0 0.0
    %881 = vmatpush1.xpose.msra.mxu0 0.0
    %882 = vmatprep.subr.mxu0 0.0
    %883 = vmatpush1.xpose.msra.mxu0 0.0
    %884 = vmatprep.subr.mxu0 0.0
    %885 = vmatpush1.xpose.msra.mxu0 0.0
    %886 = vmatprep.subr.mxu0 0.0
    %887 = vmatpush1.xpose.msra.mxu0 0.0
    %888 = vmatprep.subr.mxu0 0.0
    %889 = vmatpush1.xpose.msra.mxu0 0.0
    %890 = vmatprep.subr.mxu0 0.0
    %891 = vmatpush1.xpose.msra.mxu0 0.0
    %892 = vmatprep.subr.mxu0 0.0
    %893 = vmatpush1.xpose.msra.mxu0 0.0
    %894 = vmatprep.subr.mxu0 0.0
    %895 = vmatpush1.xpose.msra.mxu0 0.0
    %896 = vmatprep.subr.mxu0 0.0
    %897 = vmatpush1.xpose.msra.mxu0 0.0
    %898 = vmatprep.subr.mxu0 0.0
    %899 = vmatpush1.xpose.msra.mxu0 0.0
    %900 = vmatprep.subr.mxu0 0.0
    %901 = vmatpush1.xpose.msra.mxu0 0.0
    %902 = vmatprep.subr.mxu0 0.0
    %903 = vmatpush1.xpose.msra.mxu0 0.0
    %904 = vmatprep.subr.mxu0 0.0
    %905 = vmatpush1.xpose.msra.mxu0 0.0
    %906 = vmatprep.mubr.f32.mxu0 0.0
    %907 = vmatmul.mubr.f32.gmra.mrb[0].mxu0 %v838
    %v908 = vpop.f32.mrb[0].mxu0
    %v909 = vadd.f32 0.0, %v908
    %v910 = vpop.f32.mrb[0].mxu0
    %911 = vdwg.mxu0
    %v912 = vmul.f32 %v831, 0.35355338
    %v913 = vmul.f32 %v909, 0.35355338
    %v914 = vsel %vm351, %v912, -inf
    %v915 = vrot.slane %v914, 4
    %v916 = vmax.f32 %v914, %v915
    %v917 = vrot.slane %v916, 2
    %v918 = vmax.f32 %v916, %v917
    %v919 = vrot.slane %v918, 1
    %v920 = vmax.f32 %v918, %v919
    %v921 = vsel %vm351, %v913, -inf
    %v922 = vrot.slane %v921, 4
    %v923 = vmax.f32 %v921, %v922
    %v924 = vrot.slane %v923, 2
    %v925 = vmax.f32 %v923, %v924
    %v926 = vrot.slane %v925, 1
    %v927 = vmax.f32 %v925, %v926
    %v928 = vsub.f32 %v912, %v920
    %v929 = vsub.f32 %v913, %v927
    %v930 = vmul.f32 %v928, 1.442695
    %v931 = vpow.pop %v930
    %v932 = vmul.f32 %v929, 1.442695
    %v933 = vpow.pop %v932
    %v934 = vsel %vm351, %v931, 0.0
    %v935 = vrot.slane %v934, 4
    %v936 = vadd.f32 %v934, %v935
    %v937 = vrot.slane %v936, 2
    %v938 = vadd.f32 %v936, %v937
    %v939 = vrot.slane %v938, 1
    %v940 = vadd.f32 %v938, %v939
    %v941 = vsel %vm351, %v933, 0.0
    %v942 = vrot.slane %v941, 4
    %v943 = vadd.f32 %v941, %v942
    %v944 = vrot.slane %v943, 2
    %v945 = vadd.f32 %v943, %v944
    %v946 = vrot.slane %v945, 1
    %v947 = vadd.f32 %v945, %v946
    %v948 = vrcp.pop %v940
    %v949 = vmul.f32 %v931, %v948
    %v950 = vrcp.pop %v947
    %v951 = vmul.f32 %v933, %v950
    %952 = vrot.lane.b32.xlu0 %v343, 80
    %v953 = vpop.permute.xlu0 %952
    %954 = vrot.lane.b32.xlu0 %v348, 80
    %v955 = vpop.permute.xlu0 %954
    %v958 = vmul.f32 %v949, %v953
    %v959 = vmul.f32 %v951, %v955
    %960 = vrot.lane.b32.xlu0 %v343, 104
    %v961 = vpop.permute.xlu0 %960
    %962 = vrot.lane.b32.xlu0 %v258, 104
    %v963 = vpop.permute.xlu0 %962
    %v964 = vsel %vm351, %v961, 0
    %v966 = vsel %vm351, %v963, 0
    %968 = vmatprep.subr.mxu0 0.0
    %969 = vmatpush1.xpose.msra.mxu0 %v966
    %970 = vmatprep.subr.mxu0 0.0
    %971 = vmatpush1.xpose.msra.mxu0 0.0
    %972 = vmatprep.subr.mxu0 0.0
    %973 = vmatpush1.xpose.msra.mxu0 0.0
    %974 = vmatprep.subr.mxu0 0.0
    %975 = vmatpush1.xpose.msra.mxu0 0.0
    %976 = vmatprep.subr.mxu0 0.0
    %977 = vmatpush1.xpose.msra.mxu0 0.0
    %978 = vmatprep.subr.mxu0 0.0
    %979 = vmatpush1.xpose.msra.mxu0 0.0
    %980 = vmatprep.subr.mxu0 0.0
    %981 = vmatpush1.xpose.msra.mxu0 0.0
    %982 = vmatprep.subr.mxu0 0.0
    %983 = vmatpush1.xpose.msra.mxu0 0.0
    %984 = vmatprep.subr.mxu0 0.0
    %985 = vmatpush1.xpose.msra.mxu0 0.0
    %986 = vmatprep.subr.mxu0 0.0
    %987 = vmatpush1.xpose.msra.mxu0 0.0
    %988 = vmatprep.subr.mxu0 0.0
    %989 = vmatpush1.xpose.msra.mxu0 0.0
    %990 = vmatprep.subr.mxu0 0.0
    %991 = vmatpush1.xpose.msra.mxu0 0.0
    %992 = vmatprep.subr.mxu0 0.0
    %993 = vmatpush1.xpose.msra.mxu0 0.0
    %994 = vmatprep.subr.mxu0 0.0
    %995 = vmatpush1.xpose.msra.mxu0 0.0
    %996 = vmatprep.subr.mxu0 0.0
    %997 = vmatpush1.xpose.msra.mxu0 0.0
    %998 = vmatprep.subr.mxu0 0.0
    %999 = vmatpush1.xpose.msra.mxu0 0.0
    %1000 = vmatprep.subr.mxu0 0.0
    %1001 = vmatpush1.xpose.msra.mxu0 0.0
    %1002 = vmatprep.subr.mxu0 0.0
    %1003 = vmatpush1.xpose.msra.mxu0 0.0
    %1004 = vmatprep.subr.mxu0 0.0
    %1005 = vmatpush1.xpose.msra.mxu0 0.0
    %1006 = vmatprep.subr.mxu0 0.0
    %1007 = vmatpush1.xpose.msra.mxu0 0.0
    %1008 = vmatprep.subr.mxu0 0.0
    %1009 = vmatpush1.xpose.msra.mxu0 0.0
    %1010 = vmatprep.subr.mxu0 0.0
    %1011 = vmatpush1.xpose.msra.mxu0 0.0
    %1012 = vmatprep.subr.mxu0 0.0
    %1013 = vmatpush1.xpose.msra.mxu0 0.0
    %1014 = vmatprep.subr.mxu0 0.0
    %1015 = vmatpush1.xpose.msra.mxu0 0.0
    %1016 = vmatprep.subr.mxu0 0.0
    %1017 = vmatpush1.xpose.msra.mxu0 0.0
    %1018 = vmatprep.subr.mxu0 0.0
    %1019 = vmatpush1.xpose.msra.mxu0 0.0
    %1020 = vmatprep.subr.mxu0 0.0
    %1021 = vmatpush1.xpose.msra.mxu0 0.0
    %1022 = vmatprep.subr.mxu0 0.0
    %1023 = vmatpush1.xpose.msra.mxu0 0.0
    %1024 = vmatprep.subr.mxu0 0.0
    %1025 = vmatpush1.xpose.msra.mxu0 0.0
    %1026 = vmatprep.subr.mxu0 0.0
    %1027 = vmatpush1.xpose.msra.mxu0 0.0
    %1028 = vmatprep.subr.mxu0 0.0
    %1029 = vmatpush1.xpose.msra.mxu0 0.0
    %1030 = vmatprep.subr.mxu0 0.0
    %1031 = vmatpush1.xpose.msra.mxu0 0.0
    %1032 = vmatprep.mubr.f32.mxu0 0.0
    %1033 = vmatmul.mubr.f32.gmra.mrb[0].mxu0 %v964
    %v1034 = vpop.f32.mrb[0].mxu0
    %v1035 = vadd.f32 0.0, %v1034
    %v1036 = vpop.f32.mrb[0].mxu0
    %1037 = vdwg.mxu0
    %1038 = vrot.lane.b32.xlu0 %v348, 104
    %v1039 = vpop.permute.xlu0 %1038
    %1040 = vrot.lane.b32.xlu0 %v263, 104
    %v1041 = vpop.permute.xlu0 %1040
    %v1042 = vsel %vm351, %v1039, 0
    %v1044 = vsel %vm351, %v1041, 0
    %1046 = vmatprep.subr.mxu0 0.0
    %1047 = vmatpush1.xpose.msra.mxu0 %v1044
    %1048 = vmatprep.subr.mxu0 0.0
    %1049 = vmatpush1.xpose.msra.mxu0 0.0
    %1050 = vmatprep.subr.mxu0 0.0
    %1051 = vmatpush1.xpose.msra.mxu0 0.0
    %1052 = vmatprep.subr.mxu0 0.0
    %1053 = vmatpush1.xpose.msra.mxu0 0.0
    %1054 = vmatprep.subr.mxu0 0.0
    %1055 = vmatpush1.xpose.msra.mxu0 0.0
    %1056 = vmatprep.subr.mxu0 0.0
    %1057 = vmatpush1.xpose.msra.mxu0 0.0
    %1058 = vmatprep.subr.mxu0 0.0
    %1059 = vmatpush1.xpose.msra.mxu0 0.0
    %1060 = vmatprep.subr.mxu0 0.0
    %1061 = vmatpush1.xpose.msra.mxu0 0.0
    %1062 = vmatprep.subr.mxu0 0.0
    %1063 = vmatpush1.xpose.msra.mxu0 0.0
    %1064 = vmatprep.subr.mxu0 0.0
    %1065 = vmatpush1.xpose.msra.mxu0 0.0
    %1066 = vmatprep.subr.mxu0 0.0
    %1067 = vmatpush1.xpose.msra.mxu0 0.0
    %1068 = vmatprep.subr.mxu0 0.0
    %1069 = vmatpush1.xpose.msra.mxu0 0.0
    %1070 = vmatprep.subr.mxu0 0.0
    %1071 = vmatpush1.xpose.msra.mxu0 0.0
    %1072 = vmatprep.subr.mxu0 0.0
    %1073 = vmatpush1.xpose.msra.mxu0 0.0
    %1074 = vmatprep.subr.mxu0 0.0
    %1075 = vmatpush1.xpose.msra.mxu0 0.0
    %1076 = vmatprep.subr.mxu0 0.0
    %1077 = vmatpush1.xpose.msra.mxu0 0.0
    %1078 = vmatprep.subr.mxu0 0.0
    %1079 = vmatpush1.xpose.msra.mxu0 0.0
    %1080 = vmatprep.subr.mxu0 0.0
    %1081 = vmatpush1.xpose.msra.mxu0 0.0
    %1082 = vmatprep.subr.mxu0 0.0
    %1083 = vmatpush1.xpose.msra.mxu0 0.0
    %1084 = vmatprep.subr.mxu0 0.0
    %1085 = vmatpush1.xpose.msra.mxu0 0.0
    %1086 = vmatprep.subr.mxu0 0.0
    %1087 = vmatpush1.xpose.msra.mxu0 0.0
    %1088 = vmatprep.subr.mxu0 0.0
    %1089 = vmatpush1.xpose.msra.mxu0 0.0
    %1090 = vmatprep.subr.mxu0 0.0
    %1091 = vmatpush1.xpose.msra.mxu0 0.0
    %1092 = vmatprep.subr.mxu0 0.0
    %1093 = vmatpush1.xpose.msra.mxu0 0.0
    %1094 = vmatprep.subr.mxu0 0.0
    %1095 = vmatpush1.xpose.msra.mxu0 0.0
    %1096 = vmatprep.subr.mxu0 0.0
    %1097 = vmatpush1.xpose.msra.mxu0 0.0
    %1098 = vmatprep.subr.mxu0 0.0
    %1099 = vmatpush1.xpose.msra.mxu0 0.0
    %1100 = vmatprep.subr.mxu0 0.0
    %1101 = vmatpush1.xpose.msra.mxu0 0.0
    %1102 = vmatprep.subr.mxu0 0.0
    %1103 = vmatpush1.xpose.msra.mxu0 0.0
    %1104 = vmatprep.subr.mxu0 0.0
    %1105 = vmatpush1.xpose.msra.mxu0 0.0
    %1106 = vmatprep.subr.mxu0 0.0
    %1107 = vmatpush1.xpose.msra.mxu0 0.0
    %1108 = vmatprep.subr.mxu0 0.0
    %1109 = vmatpush1.xpose.msra.mxu0 0.0
    %1110 = vmatprep.mubr.f32.mxu0 0.0
    %1111 = vmatmul.mubr.f32.gmra.mrb[0].mxu0 %v1042
    %v1112 = vpop.f32.mrb[0].mxu0
    %v1113 = vadd.f32 0.0, %v1112
    %v1114 = vpop.f32.mrb[0].mxu0
    %1115 = vdwg.mxu0
    %v1116 = vmul.f32 %v1035, 0.35355338
    %v1117 = vmul.f32 %v1113, 0.35355338
    %v1118 = vsel %vm351, %v1116, -inf
    %v1119 = vrot.slane %v1118, 4
    %v1120 = vmax.f32 %v1118, %v1119
    %v1121 = vrot.slane %v1120, 2
    %v1122 = vmax.f32 %v1120, %v1121
    %v1123 = vrot.slane %v1122, 1
    %v1124 = vmax.f32 %v1122, %v1123
    %v1125 = vsel %vm351, %v1117, -inf
    %v1126 = vrot.slane %v1125, 4
    %v1127 = vmax.f32 %v1125, %v1126
    %v1128 = vrot.slane %v1127, 2
    %v1129 = vmax.f32 %v1127, %v1128
    %v1130 = vrot.slane %v1129, 1
    %v1131 = vmax.f32 %v1129, %v1130
    %v1132 = vsub.f32 %v1116, %v1124
    %v1133 = vsub.f32 %v1117, %v1131
    %v1134 = vmul.f32 %v1132, 1.442695
    %v1135 = vpow.pop %v1134
    %v1136 = vmul.f32 %v1133, 1.442695
    %v1137 = vpow.pop %v1136
    %v1138 = vsel %vm351, %v1135, 0.0
    %v1139 = vrot.slane %v1138, 4
    %v1140 = vadd.f32 %v1138, %v1139
    %v1141 = vrot.slane %v1140, 2
    %v1142 = vadd.f32 %v1140, %v1141
    %v1143 = vrot.slane %v1142, 1
    %v1144 = vadd.f32 %v1142, %v1143
    %v1145 = vsel %vm351, %v1137, 0.0
    %v1146 = vrot.slane %v1145, 4
    %v1147 = vadd.f32 %v1145, %v1146
    %v1148 = vrot.slane %v1147, 2
    %v1149 = vadd.f32 %v1147, %v1148
    %v1150 = vrot.slane %v1149, 1
    %v1151 = vadd.f32 %v1149, %v1150
    %v1152 = vrcp.pop %v1144
    %v1153 = vmul.f32 %v1135, %v1152
    %v1154 = vrcp.pop %v1151
    %v1155 = vmul.f32 %v1137, %v1154
    %1156 = vrot.lane.b32.xlu0 %v343, 72
    %v1157 = vpop.permute.xlu0 %1156
    %1158 = vrot.lane.b32.xlu0 %v348, 72
    %v1159 = vpop.permute.xlu0 %1158
    %v1162 = vmul.f32 %v1153, %v1157
    %v1163 = vmul.f32 %v1155, %v1159
    %1166 = vrot.lane.b32.xlu0 %v754, 8
    %v1167 = vpop.permute.xlu0 %1166
    %1168 = vrot.lane.b32.xlu0 %v755, 8
    %v1169 = vpop.permute.xlu0 %1168
    %1174 = vrot.lane.b32.xlu0 %v958, 16
    %v1175 = vpop.permute.xlu0 %1174
    %1176 = vrot.lane.b32.xlu0 %v959, 16
    %v1177 = vpop.permute.xlu0 %1176
    %1182 = vrot.lane.b32.xlu0 %v1162, 24
    %v1183 = vpop.permute.xlu0 %1182
    %1184 = vrot.lane.b32.xlu0 %v1163, 24
    %v1185 = vpop.permute.xlu0 %1184
    %v1188 = vsel %vm351, %v550, %v1167
    %v1189 = vsel %vm351, %v551, %v1169
    %vm1190 = vcmask 130048
    %v1191 = vsel %vm1190, %v1188, %v1175
    %v1192 = vsel %vm1190, %v1189, %v1177
    %vm1193 = vcmask 195584
    %v1194 = vsel %vm1193, %v1191, %v1183
    %v1195 = vsel %vm1193, %v1192, %v1185
    %v1196 = vld [vmem:[#allocation10] sm:$0xff]
    %v1197 = vld [vmem:[#allocation10 + $0x8] sm:$0xff]
    %v1198 = vld [vmem:[#allocation10 + $0x10] sm:$0xff]
    %v1199 = vld [vmem:[#allocation10 + $0x18] sm:$0xff]
    %v1200 = vld [vmem:[%s7] sm:$0x1]
    %v1202 = vlaneseq
    %v1203 = vshrl.u32 %v1202, 7
    %v1204 = vsub.s32 0, %v1203
    %v1205 = vrot.slane %v1200, %v1204
    %v1208 = vsel %vm107, %v1194, 0
    %v1211 = vsel %vm107, %v1195, 0
    %1213 = vmatprep.subr.mxu0 0.0
    %1214 = vmatpush1.msra.mxu0 %v1196
    %1215 = vmatprep.subr.mxu0 0.0
    %1216 = vmatpush1.msra.mxu0 %v1197
    %1217 = vmatprep.subr.mxu0 0.0
    %1218 = vmatpush1.msra.mxu0 %v1198
    %1219 = vmatprep.subr.mxu0 0.0
    %1220 = vmatpush1.msra.mxu0 %v1199
    %1221 = vmatprep.subr.mxu0 0.0
    %1222 = vmatpush1.msra.mxu0 0.0
    %1223 = vmatprep.subr.mxu0 0.0
    %1224 = vmatpush1.msra.mxu0 0.0
    %1225 = vmatprep.subr.mxu0 0.0
    %1226 = vmatpush1.msra.mxu0 0.0
    %1227 = vmatprep.subr.mxu0 0.0
    %1228 = vmatpush1.msra.mxu0 0.0
    %1229 = vmatprep.subr.mxu0 0.0
    %1230 = vmatpush1.msra.mxu0 0.0
    %1231 = vmatprep.subr.mxu0 0.0
    %1232 = vmatpush1.msra.mxu0 0.0
    %1233 = vmatprep.subr.mxu0 0.0
    %1234 = vmatpush1.msra.mxu0 0.0
    %1235 = vmatprep.subr.mxu0 0.0
    %1236 = vmatpush1.msra.mxu0 0.0
    %1237 = vmatprep.subr.mxu0 0.0
    %1238 = vmatpush1.msra.mxu0 0.0
    %1239 = vmatprep.subr.mxu0 0.0
    %1240 = vmatpush1.msra.mxu0 0.0
    %1241 = vmatprep.subr.mxu0 0.0
    %1242 = vmatpush1.msra.mxu0 0.0
    %1243 = vmatprep.subr.mxu0 0.0
    %1244 = vmatpush1.msra.mxu0 0.0
    %1245 = vmatprep.subr.mxu0 0.0
    %1246 = vmatpush1.msra.mxu0 0.0
    %1247 = vmatprep.subr.mxu0 0.0
    %1248 = vmatpush1.msra.mxu0 0.0
    %1249 = vmatprep.subr.mxu0 0.0
    %1250 = vmatpush1.msra.mxu0 0.0
    %1251 = vmatprep.subr.mxu0 0.0
    %1252 = vmatpush1.msra.mxu0 0.0
    %1253 = vmatprep.subr.mxu0 0.0
    %1254 = vmatpush1.msra.mxu0 0.0
    %1255 = vmatprep.subr.mxu0 0.0
    %1256 = vmatpush1.msra.mxu0 0.0
    %1257 = vmatprep.subr.mxu0 0.0
    %1258 = vmatpush1.msra.mxu0 0.0
    %1259 = vmatprep.subr.mxu0 0.0
    %1260 = vmatpush1.msra.mxu0 0.0
    %1261 = vmatprep.subr.mxu0 0.0
    %1262 = vmatpush1.msra.mxu0 0.0
    %1263 = vmatprep.subr.mxu0 0.0
    %1264 = vmatpush1.msra.mxu0 0.0
    %1265 = vmatprep.subr.mxu0 0.0
    %1266 = vmatpush1.msra.mxu0 0.0
    %1267 = vmatprep.subr.mxu0 0.0
    %1268 = vmatpush1.msra.mxu0 0.0
    %1269 = vmatprep.subr.mxu0 0.0
    %1270 = vmatpush1.msra.mxu0 0.0
    %1271 = vmatprep.subr.mxu0 0.0
    %1272 = vmatpush1.msra.mxu0 0.0
    %1273 = vmatprep.subr.mxu0 0.0
    %1274 = vmatpush1.msra.mxu0 0.0
    %1275 = vmatprep.subr.mxu0 0.0
    %1276 = vmatpush1.msra.mxu0 0.0
    %1277 = vmatprep.mubr.f32.mxu0 0.0
    %1278 = vmatmul.mubr.f32.gmra.mrb[0].mxu0 %v1208
    %v1279 = vpop.f32.mrb[0].mxu0
    %v1280 = vadd.f32 %v1205, %v1279
    %v1281 = vpop.f32.mrb[0].mxu0
    %1282 = vmatprep.mubr.f32.mxu0 0.0
    %1283 = vmatmul.mubr.f32.gmra.mrb[0].mxu0 %v1211
    %v1284 = vpop.f32.mrb[0].mxu0
    %v1285 = vadd.f32 %v1205, %v1284
    %v1286 = vpop.f32.mrb[0].mxu0
    %1287 = vdwg.mxu0
    %v1288 = vld [vmem:[%s8] sm:$0x1]
    %v1290 = vlaneseq
    %v1291 = vshrl.u32 %v1290, 7
    %v1292 = vsub.s32 0, %v1291
    %v1293 = vrot.slane %v1288, %v1292
    %v1295 = vmul.f32 %v1293, %v1280
    %v1296 = vmul.f32 %v1293, %v1285
    %v1297 = vadd.f32 %v101, %v1295
    %v1298 = vadd.f32 %v102, %v1296
    %1299 = vst.msk [vmem:[#allocation11] sm:$0xff] %vm107, %v1297
    %1300 = vst.msk [vmem:[#allocation11 + $0x8] sm:$0xff] %vm107, %v1298
    // Predicated region
    $region58: #{tpu_custom_call.1} parent=1 // pred_check
      _
    $region59: #{tpu_custom_call.1} parent=1 // pred_check_branch
      %1302 = sbr.rel (0) target = $region61
    $region60: #{tpu_custom_call.1} parent=1 // pred_region
      %s1304 = ssub.s32 256, 256
      %1305 = vsyncadd [#allocation4], %s1304
      %s1306 = sshll.u32 [#allocation11], 4
      %s1307 = int_to_ptr.vmem [resolvable:$true] %s1306
      %1312 = dma.vmem_to_hbm [thread:$0]  %s1307, 256, %s9, [#allocation4], 128, 128, 8
    $region61: #{tpu_custom_call.1} parent=1 // pred_fallthru
      _
    // Predicated region
    $region62: #{tpu_custom_call.1} parent=1 // pred_check
      _
    $region63: #{tpu_custom_call.1} parent=1 // pred_check_branch
      %1314 = sbr.rel (0) target = $region65
    $region64: #{tpu_custom_call.1} parent=1 // pred_region
      %1315 = dma.done [#allocation4], 256
    $region65: #{tpu_custom_call.1} parent=1 // pred_fallthru
      _
    %1316 = vsyncpa [#allocation3], 1
    %1317 = vsyncpa [#allocation6], 1
    %1318 = vsyncpa [#allocation9], 1
    %1319 = vsyncpa [#allocation4], 1

</llo_original>
